<compile_context>
chip_gen: v6e
topology: v6e:2x2x1
jax: 0.10.0
libtpu: 0.0.40
codegen_flags: <defaults>
</compile_context>

<pallas_src>
import math
from functools import partial

import jax
import jax.numpy as jnp
from jax.experimental import pallas as pl
from jax.experimental.pallas import tpu as pltpu


def _attention_body(q_ref, k_ref, v_ref, bias_ref,
                    wq_ref, wk_ref, wv_ref, bq_ref, bk_ref, bv_ref,
                    woq_ref, wox_ref, bo_ref, gamma_ref, beta_ref,
                    out_ref, *, num_heads, eps):
    Bb, T, D = q_ref.shape
    d_h = D // num_heads

    q = q_ref[...]                                  # (Bb, T, D) f32
    k = k_ref[...]
    v = v_ref[...]

    # Collapse leading dims so the shared projections are single full-width
    # matmuls over all (batch, time) rows.
    q2 = q.reshape(Bb * T, D)
    k2 = k.reshape(Bb * T, D)
    v2 = v.reshape(Bb * T, D)

    q2_bf = q2.astype(jnp.bfloat16)
    k2_bf = k2.astype(jnp.bfloat16)
    v2_bf = v2.astype(jnp.bfloat16)

    # --- full-width (D x D) projections; 1/sqrt(d_h) already folded into wq/bq.
    qp = jnp.dot(q2_bf, wq_ref[...], preferred_element_type=jnp.float32) + bq_ref[...]
    kp = jnp.dot(k2_bf, wk_ref[...], preferred_element_type=jnp.float32) + bk_ref[...]
    vp = jnp.dot(v2_bf, wv_ref[...], preferred_element_type=jnp.float32) + bv_ref[...]

    # bf16 operands for the attention matmuls; restore the batch axis.
    qp3 = qp.reshape(Bb, T, D).astype(jnp.bfloat16)
    kp3 = kp.reshape(Bb, T, D).astype(jnp.bfloat16)
    vp3 = vp.reshape(Bb, T, D).astype(jnp.bfloat16)

    bias = bias_ref[...] if bias_ref is not None else None   # (Bb, T, T) bf16

    ctx_heads = []
    for h in range(num_heads):                      # static unrolled head loop
        sl = slice(h * d_h, (h + 1) * d_h)
        qh = qp3[:, :, sl]                          # (Bb, T, d_h) static lane slice
        kh = kp3[:, :, sl]
        vh = vp3[:, :, sl]

        # scores (f32): batched over the block-batch dim only.
        s = jnp.einsum('bqd,bkd->bqk', qh, kh,
                       preferred_element_type=jnp.float32)   # (Bb, T, T)
        if bias is not None:
            # Additive -1e9 mask: one VALU add per score.
            # (Fully-masked rows give softmax of raw scores rather than a
            #  uniform row; both are garbage, matching masked_fill in spirit.)
            s = s + bias

        # Softmax over keys (f32), normalization deferred past the PV matmul.
        smax = jnp.max(s, axis=-1, keepdims=True)
        p = jnp.exp(s - smax)                                 # unnormalized
        denom = jnp.sum(p, axis=-1, keepdims=True)            # (Bb, T, 1)

        ctx = jnp.einsum('bqk,bkd->bqd', p.astype(jnp.bfloat16), vh,
                         preferred_element_type=jnp.float32)  # (Bb, T, d_h)
        ctx = ctx / denom                  # exact, cheap: only T*d_h per row-block
        ctx_heads.append(ctx)

    # Re-concatenate heads along the feature axis -> (Bb, T, D), PyTorch order.
    x = jnp.concatenate(ctx_heads, axis=-1)
    x2_bf = x.reshape(Bb * T, D).astype(jnp.bfloat16)

    # --- output projection: concat([q, x]) @ Wo == q @ Wo[:D] + x @ Wo[D:]
    res = jnp.dot(q2_bf, woq_ref[...], preferred_element_type=jnp.float32)
    res = res + jnp.dot(x2_bf, wox_ref[...], preferred_element_type=jnp.float32)
    res = res + bo_ref[...] + q2                    # residual uses the f32 query

    # --- LayerNorm over last dim (f32, eps=1e-5) ---
    mean = jnp.mean(res, axis=-1, keepdims=True)
    c = res - mean
    var = jnp.mean(c * c, axis=-1, keepdims=True)
    out = c * jax.lax.rsqrt(var + eps) * gamma_ref[...] + beta_ref[...]

    out_ref[...] = out.reshape(Bb, T, D).astype(out_ref.dtype)


def _mha_kernel(q_ref, k_ref, v_ref,
                wq_ref, wk_ref, wv_ref, bq_ref, bk_ref, bv_ref,
                woq_ref, wox_ref, bo_ref, gamma_ref, beta_ref,
                out_ref, *, num_heads, eps):
    _attention_body(q_ref, k_ref, v_ref, None,
                    wq_ref, wk_ref, wv_ref, bq_ref, bk_ref, bv_ref,
                    woq_ref, wox_ref, bo_ref, gamma_ref, beta_ref,
                    out_ref, num_heads=num_heads, eps=eps)


def _mha_kernel_masked(q_ref, k_ref, v_ref, bias_ref,
                       wq_ref, wk_ref, wv_ref, bq_ref, bk_ref, bv_ref,
                       woq_ref, wox_ref, bo_ref, gamma_ref, beta_ref,
                       out_ref, *, num_heads, eps):
    _attention_body(q_ref, k_ref, v_ref, bias_ref,
                    wq_ref, wk_ref, wv_ref, bq_ref, bk_ref, bv_ref,
                    woq_ref, wox_ref, bo_ref, gamma_ref, beta_ref,
                    out_ref, num_heads=num_heads, eps=eps)


def multi_headed_attention(query, key, value, params, mask=None, *,
                           num_heads, block_b=None):
    """query/key/value: (B, T, D) float32. mask: optional (B, T, T), 0 = masked."""
    B, T, D = query.shape
    assert D % num_heads == 0
    d_h = D // num_heads
    scale = 1.0 / math.sqrt(d_h)

    # Block several batch elements per grid step (amortizes per-step overhead).
    if block_b is None:
        block_b = 1
        for cand in range(min(B, 8), 0, -1):
            if B % cand == 0:
                block_b = cand
                break
    assert B % block_b == 0
    grid = (B // block_b,)

    # --- wrapper-side weight preprocessing (cheap, amortizable XLA ops) ---
    wq = (params["wq"] * scale).astype(jnp.bfloat16)     # (D, D), scale folded in
    wk = params["wk"].astype(jnp.bfloat16)
    wv = params["wv"].astype(jnp.bfloat16)
    bq = (params["bq"] * scale).astype(jnp.float32)      # (1, D) f32 biases
    bk = params["bk"].astype(jnp.float32)
    bv = params["bv"].astype(jnp.float32)
    wo_q = params["wo"][:D].astype(jnp.bfloat16)         # (D, D)  query half
    wo_x = params["wo"][D:].astype(jnp.bfloat16)         # (D, D)  context half
    bo = params["bo"].astype(jnp.float32)
    gamma = params["gamma"].astype(jnp.float32)
    beta = params["beta"].astype(jnp.float32)

    weights = [wq, wk, wv, bq, bk, bv, wo_q, wo_x, bo, gamma, beta]

    seq_spec = pl.BlockSpec((block_b, T, D), lambda b: (b, 0, 0))

    def const_spec(shape):
        nd = len(shape)
        return pl.BlockSpec(shape, lambda b, _nd=nd: (0,) * _nd)

    weight_specs = [const_spec(tuple(w.shape)) for w in weights]

    # Advisory cost estimate for the XLA scheduler.
    flops = int(B * (10 * T * D * D + 4 * T * T * D))
    transcendentals = int(B * num_heads * T * T)
    bytes_accessed = int(4 * B * T * D * 4
                         + sum(int(w.size) * w.dtype.itemsize for w in weights)
                         + (2 * B * T * T if mask is not None else 0))
    cost = pl.CostEstimate(flops=flops, transcendentals=transcendentals,
                           bytes_accessed=bytes_accessed)

    compiler_params = pltpu.CompilerParams(
        dimension_semantics=("parallel",),
        vmem_limit_bytes=48 * 1024 * 1024,   # above defaults, under v7x physical
    )

    if mask is None:
        # Specialized no-mask kernel: no (B, T, T) DMA, no per-score add.
        kernel = partial(_mha_kernel, num_heads=num_heads, eps=1e-5)
        in_specs = [seq_spec, seq_spec, seq_spec] + weight_specs
        args = (query, key, value, *weights)
    else:
        # Additive bf16 bias: -1e9 where masked, 0 elsewhere (half the HBM
        # traffic of an f32 mask, one add instead of cast+compare+select).
        bias = jnp.where(mask == 0, jnp.float32(-1e9), jnp.float32(0.0)
                         ).astype(jnp.bfloat16)
        bias_spec = pl.BlockSpec((block_b, T, T), lambda b: (b, 0, 0))
        kernel = partial(_mha_kernel_masked, num_heads=num_heads, eps=1e-5)
        in_specs = [seq_spec, seq_spec, seq_spec, bias_spec] + weight_specs
        args = (query, key, value, bias, *weights)

    return pl.pallas_call(
        kernel,
        out_shape=jax.ShapeDtypeStruct((B, T, D), jnp.float32),
        grid=grid,
        in_specs=in_specs,
        out_specs=seq_spec,
        compiler_params=compiler_params,
        cost_estimate=cost,
    )(*args)


def init_params(key, d_model):
    """Deterministic parameter init matching the PyTorch module's shapes.
    Weights are stored as (in_features, out_features)."""
    ks = jax.random.split(key, 8)
    scale = 1.0 / math.sqrt(d_model)
    scale_o = 1.0 / math.sqrt(2 * d_model)
    return {
        "wq": jax.random.uniform(ks[0], (d_model, d_model), jnp.float32, -scale, scale),
        "bq": jax.random.uniform(ks[1], (1, d_model), jnp.float32, -scale, scale),
        "wk": jax.random.uniform(ks[2], (d_model, d_model), jnp.float32, -scale, scale),
        "bk": jax.random.uniform(ks[3], (1, d_model), jnp.float32, -scale, scale),
        "wv": jax.random.uniform(ks[4], (d_model, d_model), jnp.float32, -scale, scale),
        "bv": jax.random.uniform(ks[5], (1, d_model), jnp.float32, -scale, scale),
        "wo": jax.random.uniform(ks[6], (2 * d_model, d_model), jnp.float32, -scale_o, scale_o),
        "bo": jax.random.uniform(ks[7], (1, d_model), jnp.float32, -scale_o, scale_o),
        "gamma": jnp.ones((1, d_model), jnp.float32),
        "beta": jnp.zeros((1, d_model), jnp.float32),
    }


def _reference(query, key, value, params, mask, num_heads):
    """Pure-JAX f32 reference matching the PyTorch forward exactly."""
    B, T, D = query.shape
    d_h = D // num_heads

    def lin(x, w, b):
        return x @ w + b

    q = lin(query, params["wq"], params["bq"])
    k = lin(key, params["wk"], params["bk"])
    v = lin(value, params["wv"], params["bv"])

    def split(x):
        return x.reshape(B, T, num_heads, d_h).transpose(0, 2, 1, 3)

    qh, kh, vh = split(q), split(k), split(v)
    scores = jnp.einsum('bhqd,bhkd->bhqk', qh, kh) / math.sqrt(d_h)
    if mask is not None:
        scores = jnp.where(mask[:, None] == 0, -1e9, scores)
    p = jax.nn.softmax(scores, axis=-1)
    ctx = jnp.einsum('bhqk,bhkd->bhqd', p, vh)
    x = ctx.transpose(0, 2, 1, 3).reshape(B, T, D)
    qx = jnp.concatenate([query, x], axis=-1)
    res = qx @ params["wo"] + params["bo"] + query
    mean = res.mean(-1, keepdims=True)
    var = ((res - mean) ** 2).mean(-1, keepdims=True)
    return (res - mean) / jnp.sqrt(var + 1e-5) * params["gamma"] + params["beta"]


if __name__ == "__main__":
    B, T, D, H = 2, 8, 32, 4   # batch, seq, d_model, heads (d_model % h == 0)
    root = jax.random.PRNGKey(0)
    kq, kk, kv, kp = jax.random.split(root, 4)

    query = jax.random.normal(kq, (B, T, D), jnp.float32)
    key_in = jax.random.normal(kk, (B, T, D), jnp.float32)
    value = jax.random.normal(kv, (B, T, D), jnp.float32)
    params = init_params(kp, D)

    # --- mask=None path (specialized kernel, no mask DMA) ---
    out = multi_headed_attention(query, key_in, value, params, mask=None, num_heads=H)
    out = jax.block_until_ready(out)
    assert out.shape == (B, T, D)
    ref = _reference(query, key_in, value, params, None, H)
    assert float(jnp.max(jnp.abs(out - ref))) < 0.2  # bf16 MXU operands

    # --- masked path (causal mask -> additive bf16 bias in HBM) ---
    causal = jnp.tril(jnp.ones((T, T), jnp.int32))
    mask = jnp.broadcast_to(causal, (B, T, T))
    out_m = multi_headed_attention(query, key_in, value, params, mask=mask, num_heads=H)
    out_m = jax.block_until_ready(out_m)
    assert out_m.shape == (B, T, D)
    ref_m = _reference(query, key_in, value, params, mask, H)
    assert float(jnp.max(jnp.abs(out_m - ref_m))) < 0.2

    print("KERNEL_OK")
</pallas_src>

<mosaic_0001>
module attributes {stable_mosaic.version = 11 : i64} {
  func.func @_mha_kernel(%arg0: i32, %arg1: memref<2x8x32xf32, #tpu.memory_space<vmem>>, %arg2: memref<2x8x32xf32, #tpu.memory_space<vmem>>, %arg3: memref<2x8x32xf32, #tpu.memory_space<vmem>>, %arg4: memref<32x32xbf16, #tpu.memory_space<vmem>>, %arg5: memref<32x32xbf16, #tpu.memory_space<vmem>>, %arg6: memref<32x32xbf16, #tpu.memory_space<vmem>>, %arg7: memref<1x32xf32, #tpu.memory_space<vmem>>, %arg8: memref<1x32xf32, #tpu.memory_space<vmem>>, %arg9: memref<1x32xf32, #tpu.memory_space<vmem>>, %arg10: memref<32x32xbf16, #tpu.memory_space<vmem>>, %arg11: memref<32x32xbf16, #tpu.memory_space<vmem>>, %arg12: memref<1x32xf32, #tpu.memory_space<vmem>>, %arg13: memref<1x32xf32, #tpu.memory_space<vmem>>, %arg14: memref<1x32xf32, #tpu.memory_space<vmem>>, %arg15: memref<2x8x32xf32, #tpu.memory_space<vmem>>) attributes {dimension_semantics = [#tpu.dimension_semantics<parallel>], iteration_bounds = array<i64: 1>, scalar_prefetch = 0 : i64, scratch_operands = 0 : i64, tpu.core_type = #tpu.core_type<tc>, window_params = [{transform_indices = @transform_0, window_bounds = array<i64: 2, 8, 32>}, {transform_indices = @transform_1, window_bounds = array<i64: 2, 8, 32>}, {transform_indices = @transform_2, window_bounds = array<i64: 2, 8, 32>}, {pipeline_mode = #tpu.pipeline_mode<synchronous>, transform_indices = @transform_3, window_bounds = array<i64: 32, 32>}, {pipeline_mode = #tpu.pipeline_mode<synchronous>, transform_indices = @transform_4, window_bounds = array<i64: 32, 32>}, {pipeline_mode = #tpu.pipeline_mode<synchronous>, transform_indices = @transform_5, window_bounds = array<i64: 32, 32>}, {pipeline_mode = #tpu.pipeline_mode<synchronous>, transform_indices = @transform_6, window_bounds = array<i64: 1, 32>}, {pipeline_mode = #tpu.pipeline_mode<synchronous>, transform_indices = @transform_7, window_bounds = array<i64: 1, 32>}, {pipeline_mode = #tpu.pipeline_mode<synchronous>, transform_indices = @transform_8, window_bounds = array<i64: 1, 32>}, {pipeline_mode = #tpu.pipeline_mode<synchronous>, transform_indices = @transform_9, window_bounds = array<i64: 32, 32>}, {pipeline_mode = #tpu.pipeline_mode<synchronous>, transform_indices = @transform_10, window_bounds = array<i64: 32, 32>}, {pipeline_mode = #tpu.pipeline_mode<synchronous>, transform_indices = @transform_11, window_bounds = array<i64: 1, 32>}, {pipeline_mode = #tpu.pipeline_mode<synchronous>, transform_indices = @transform_12, window_bounds = array<i64: 1, 32>}, {pipeline_mode = #tpu.pipeline_mode<synchronous>, transform_indices = @transform_13, window_bounds = array<i64: 1, 32>}, {transform_indices = @transform_14, window_bounds = array<i64: 2, 8, 32>}]} {
    %c0 = arith.constant 0 : index
    %c0_0 = arith.constant 0 : index
    %c0_1 = arith.constant 0 : index
    %0 = vector.load %arg1[%c0, %c0_0, %c0_1] : memref<2x8x32xf32, #tpu.memory_space<vmem>>, vector<2x8x32xf32>
    %c0_2 = arith.constant 0 : index
    %c0_3 = arith.constant 0 : index
    %c0_4 = arith.constant 0 : index
    %1 = vector.load %arg2[%c0_2, %c0_3, %c0_4] : memref<2x8x32xf32, #tpu.memory_space<vmem>>, vector<2x8x32xf32>
    %c0_5 = arith.constant 0 : index
    %c0_6 = arith.constant 0 : index
    %c0_7 = arith.constant 0 : index
    %2 = vector.load %arg3[%c0_5, %c0_6, %c0_7] : memref<2x8x32xf32, #tpu.memory_space<vmem>>, vector<2x8x32xf32>
    %3 = vector.shape_cast %0 : vector<2x8x32xf32> to vector<16x32xf32>
    %4 = vector.shape_cast %1 : vector<2x8x32xf32> to vector<16x32xf32>
    %5 = vector.shape_cast %2 : vector<2x8x32xf32> to vector<16x32xf32>
    %6 = arith.truncf %3 : vector<16x32xf32> to vector<16x32xbf16>
    %7 = arith.truncf %4 : vector<16x32xf32> to vector<16x32xbf16>
    %8 = arith.truncf %5 : vector<16x32xf32> to vector<16x32xbf16>
    %c0_8 = arith.constant 0 : index
    %c0_9 = arith.constant 0 : index
    %9 = vector.load %arg4[%c0_8, %c0_9] : memref<32x32xbf16, #tpu.memory_space<vmem>>, vector<32x32xbf16>
    %cst = arith.constant dense<0.000000e+00> : vector<16x32xf32>
    %10 = tpu.matmul %6, %9, %cst {dimension_numbers = #tpu.dot_dimension_numbers<[1], [0], [0], [1], [0, 0, 1, 1], [], []>} : vector<16x32xbf16>, vector<32x32xbf16>, vector<16x32xf32> -> vector<16x32xf32>
    %c0_10 = arith.constant 0 : index
    %c0_11 = arith.constant 0 : index
    %11 = vector.load %arg7[%c0_10, %c0_11] : memref<1x32xf32, #tpu.memory_space<vmem>>, vector<1x32xf32>
    %12 = vector.broadcast %11 : vector<1x32xf32> to vector<16x32xf32>
    %13 = arith.addf %10, %12 : vector<16x32xf32>
    %c0_12 = arith.constant 0 : index
    %c0_13 = arith.constant 0 : index
    %14 = vector.load %arg5[%c0_12, %c0_13] : memref<32x32xbf16, #tpu.memory_space<vmem>>, vector<32x32xbf16>
    %cst_14 = arith.constant dense<0.000000e+00> : vector<16x32xf32>
    %15 = tpu.matmul %7, %14, %cst_14 {dimension_numbers = #tpu.dot_dimension_numbers<[1], [0], [0], [1], [0, 0, 1, 1], [], []>} : vector<16x32xbf16>, vector<32x32xbf16>, vector<16x32xf32> -> vector<16x32xf32>
    %c0_15 = arith.constant 0 : index
    %c0_16 = arith.constant 0 : index
    %16 = vector.load %arg8[%c0_15, %c0_16] : memref<1x32xf32, #tpu.memory_space<vmem>>, vector<1x32xf32>
    %17 = vector.broadcast %16 : vector<1x32xf32> to vector<16x32xf32>
    %18 = arith.addf %15, %17 : vector<16x32xf32>
    %c0_17 = arith.constant 0 : index
    %c0_18 = arith.constant 0 : index
    %19 = vector.load %arg6[%c0_17, %c0_18] : memref<32x32xbf16, #tpu.memory_space<vmem>>, vector<32x32xbf16>
    %cst_19 = arith.constant dense<0.000000e+00> : vector<16x32xf32>
    %20 = tpu.matmul %8, %19, %cst_19 {dimension_numbers = #tpu.dot_dimension_numbers<[1], [0], [0], [1], [0, 0, 1, 1], [], []>} : vector<16x32xbf16>, vector<32x32xbf16>, vector<16x32xf32> -> vector<16x32xf32>
    %c0_20 = arith.constant 0 : index
    %c0_21 = arith.constant 0 : index
    %21 = vector.load %arg9[%c0_20, %c0_21] : memref<1x32xf32, #tpu.memory_space<vmem>>, vector<1x32xf32>
    %22 = vector.broadcast %21 : vector<1x32xf32> to vector<16x32xf32>
    %23 = arith.addf %20, %22 : vector<16x32xf32>
    %24 = vector.shape_cast %13 : vector<16x32xf32> to vector<2x8x32xf32>
    %25 = arith.truncf %24 : vector<2x8x32xf32> to vector<2x8x32xbf16>
    %26 = vector.shape_cast %18 : vector<16x32xf32> to vector<2x8x32xf32>
    %27 = arith.truncf %26 : vector<2x8x32xf32> to vector<2x8x32xbf16>
    %28 = vector.shape_cast %23 : vector<16x32xf32> to vector<2x8x32xf32>
    %29 = arith.truncf %28 : vector<2x8x32xf32> to vector<2x8x32xbf16>
    %30 = vector.extract_strided_slice %25 {offsets = [0, 0, 0], sizes = [2, 8, 8], strides = [1, 1, 1]} : vector<2x8x32xbf16> to vector<2x8x8xbf16>
    %31 = vector.extract_strided_slice %27 {offsets = [0, 0, 0], sizes = [2, 8, 8], strides = [1, 1, 1]} : vector<2x8x32xbf16> to vector<2x8x8xbf16>
    %32 = vector.extract_strided_slice %29 {offsets = [0, 0, 0], sizes = [2, 8, 8], strides = [1, 1, 1]} : vector<2x8x32xbf16> to vector<2x8x8xbf16>
    "tpu.trace_start"() <{level = 10 : i32, message = "bqd,bkd->bqk"}> : () -> ()
    %cst_22 = arith.constant dense<0.000000e+00> : vector<2x8x8xf32>
    %33 = tpu.matmul %30, %31, %cst_22 {dimension_numbers = #tpu.dot_dimension_numbers<[2], [2], [1], [1], [0, 0, 0, 1, 1, 1], [0], [0]>} : vector<2x8x8xbf16>, vector<2x8x8xbf16>, vector<2x8x8xf32> -> vector<2x8x8xf32>
    "tpu.trace_stop"() : () -> ()
    %cst_23 = arith.constant dense<0xFF800000> : vector<2x8xf32>
    %34 = vector.multi_reduction <maximumf>, %33, %cst_23 [2] : vector<2x8x8xf32> to vector<2x8xf32>
    %35 = vector.shape_cast %34 : vector<2x8xf32> to vector<2x8x1xf32>
    %36 = vector.broadcast %35 : vector<2x8x1xf32> to vector<2x8x8xf32>
    %37 = arith.subf %33, %36 : vector<2x8x8xf32>
    %38 = math.exp %37 : vector<2x8x8xf32>
    %cst_24 = arith.constant dense<0.000000e+00> : vector<2x8xf32>
    %39 = vector.multi_reduction <add>, %38, %cst_24 [2] : vector<2x8x8xf32> to vector<2x8xf32>
    %40 = vector.shape_cast %39 : vector<2x8xf32> to vector<2x8x1xf32>
    %41 = arith.truncf %38 : vector<2x8x8xf32> to vector<2x8x8xbf16>
    "tpu.trace_start"() <{level = 10 : i32, message = "bqk,bkd->bqd"}> : () -> ()
    %cst_25 = arith.constant dense<0.000000e+00> : vector<2x8x8xf32>
    %42 = tpu.matmul %41, %32, %cst_25 {dimension_numbers = #tpu.dot_dimension_numbers<[2], [1], [1], [2], [0, 0, 0, 1, 1, 2], [0], [0]>} : vector<2x8x8xbf16>, vector<2x8x8xbf16>, vector<2x8x8xf32> -> vector<2x8x8xf32>
    "tpu.trace_stop"() : () -> ()
    %43 = vector.broadcast %40 : vector<2x8x1xf32> to vector<2x8x8xf32>
    %44 = arith.divf %42, %43 : vector<2x8x8xf32>
    %45 = vector.extract_strided_slice %25 {offsets = [0, 0, 8], sizes = [2, 8, 8], strides = [1, 1, 1]} : vector<2x8x32xbf16> to vector<2x8x8xbf16>
    %46 = vector.extract_strided_slice %27 {offsets = [0, 0, 8], sizes = [2, 8, 8], strides = [1, 1, 1]} : vector<2x8x32xbf16> to vector<2x8x8xbf16>
    %47 = vector.extract_strided_slice %29 {offsets = [0, 0, 8], sizes = [2, 8, 8], strides = [1, 1, 1]} : vector<2x8x32xbf16> to vector<2x8x8xbf16>
    "tpu.trace_start"() <{level = 10 : i32, message = "bqd,bkd->bqk"}> : () -> ()
    %cst_26 = arith.constant dense<0.000000e+00> : vector<2x8x8xf32>
    %48 = tpu.matmul %45, %46, %cst_26 {dimension_numbers = #tpu.dot_dimension_numbers<[2], [2], [1], [1], [0, 0, 0, 1, 1, 1], [0], [0]>} : vector<2x8x8xbf16>, vector<2x8x8xbf16>, vector<2x8x8xf32> -> vector<2x8x8xf32>
    "tpu.trace_stop"() : () -> ()
    %cst_27 = arith.constant dense<0xFF800000> : vector<2x8xf32>
    %49 = vector.multi_reduction <maximumf>, %48, %cst_27 [2] : vector<2x8x8xf32> to vector<2x8xf32>
    %50 = vector.shape_cast %49 : vector<2x8xf32> to vector<2x8x1xf32>
    %51 = vector.broadcast %50 : vector<2x8x1xf32> to vector<2x8x8xf32>
    %52 = arith.subf %48, %51 : vector<2x8x8xf32>
    %53 = math.exp %52 : vector<2x8x8xf32>
    %cst_28 = arith.constant dense<0.000000e+00> : vector<2x8xf32>
    %54 = vector.multi_reduction <add>, %53, %cst_28 [2] : vector<2x8x8xf32> to vector<2x8xf32>
    %55 = vector.shape_cast %54 : vector<2x8xf32> to vector<2x8x1xf32>
    %56 = arith.truncf %53 : vector<2x8x8xf32> to vector<2x8x8xbf16>
    "tpu.trace_start"() <{level = 10 : i32, message = "bqk,bkd->bqd"}> : () -> ()
    %cst_29 = arith.constant dense<0.000000e+00> : vector<2x8x8xf32>
    %57 = tpu.matmul %56, %47, %cst_29 {dimension_numbers = #tpu.dot_dimension_numbers<[2], [1], [1], [2], [0, 0, 0, 1, 1, 2], [0], [0]>} : vector<2x8x8xbf16>, vector<2x8x8xbf16>, vector<2x8x8xf32> -> vector<2x8x8xf32>
    "tpu.trace_stop"() : () -> ()
    %58 = vector.broadcast %55 : vector<2x8x1xf32> to vector<2x8x8xf32>
    %59 = arith.divf %57, %58 : vector<2x8x8xf32>
    %60 = vector.extract_strided_slice %25 {offsets = [0, 0, 16], sizes = [2, 8, 8], strides = [1, 1, 1]} : vector<2x8x32xbf16> to vector<2x8x8xbf16>
    %61 = vector.extract_strided_slice %27 {offsets = [0, 0, 16], sizes = [2, 8, 8], strides = [1, 1, 1]} : vector<2x8x32xbf16> to vector<2x8x8xbf16>
    %62 = vector.extract_strided_slice %29 {offsets = [0, 0, 16], sizes = [2, 8, 8], strides = [1, 1, 1]} : vector<2x8x32xbf16> to vector<2x8x8xbf16>
    "tpu.trace_start"() <{level = 10 : i32, message = "bqd,bkd->bqk"}> : () -> ()
    %cst_30 = arith.constant dense<0.000000e+00> : vector<2x8x8xf32>
    %63 = tpu.matmul %60, %61, %cst_30 {dimension_numbers = #tpu.dot_dimension_numbers<[2], [2], [1], [1], [0, 0, 0, 1, 1, 1], [0], [0]>} : vector<2x8x8xbf16>, vector<2x8x8xbf16>, vector<2x8x8xf32> -> vector<2x8x8xf32>
    "tpu.trace_stop"() : () -> ()
    %cst_31 = arith.constant dense<0xFF800000> : vector<2x8xf32>
    %64 = vector.multi_reduction <maximumf>, %63, %cst_31 [2] : vector<2x8x8xf32> to vector<2x8xf32>
    %65 = vector.shape_cast %64 : vector<2x8xf32> to vector<2x8x1xf32>
    %66 = vector.broadcast %65 : vector<2x8x1xf32> to vector<2x8x8xf32>
    %67 = arith.subf %63, %66 : vector<2x8x8xf32>
    %68 = math.exp %67 : vector<2x8x8xf32>
    %cst_32 = arith.constant dense<0.000000e+00> : vector<2x8xf32>
    %69 = vector.multi_reduction <add>, %68, %cst_32 [2] : vector<2x8x8xf32> to vector<2x8xf32>
    %70 = vector.shape_cast %69 : vector<2x8xf32> to vector<2x8x1xf32>
    %71 = arith.truncf %68 : vector<2x8x8xf32> to vector<2x8x8xbf16>
    "tpu.trace_start"() <{level = 10 : i32, message = "bqk,bkd->bqd"}> : () -> ()
    %cst_33 = arith.constant dense<0.000000e+00> : vector<2x8x8xf32>
    %72 = tpu.matmul %71, %62, %cst_33 {dimension_numbers = #tpu.dot_dimension_numbers<[2], [1], [1], [2], [0, 0, 0, 1, 1, 2], [0], [0]>} : vector<2x8x8xbf16>, vector<2x8x8xbf16>, vector<2x8x8xf32> -> vector<2x8x8xf32>
    "tpu.trace_stop"() : () -> ()
    %73 = vector.broadcast %70 : vector<2x8x1xf32> to vector<2x8x8xf32>
    %74 = arith.divf %72, %73 : vector<2x8x8xf32>
    %75 = vector.extract_strided_slice %25 {offsets = [0, 0, 24], sizes = [2, 8, 8], strides = [1, 1, 1]} : vector<2x8x32xbf16> to vector<2x8x8xbf16>
    %76 = vector.extract_strided_slice %27 {offsets = [0, 0, 24], sizes = [2, 8, 8], strides = [1, 1, 1]} : vector<2x8x32xbf16> to vector<2x8x8xbf16>
    %77 = vector.extract_strided_slice %29 {offsets = [0, 0, 24], sizes = [2, 8, 8], strides = [1, 1, 1]} : vector<2x8x32xbf16> to vector<2x8x8xbf16>
    "tpu.trace_start"() <{level = 10 : i32, message = "bqd,bkd->bqk"}> : () -> ()
    %cst_34 = arith.constant dense<0.000000e+00> : vector<2x8x8xf32>
    %78 = tpu.matmul %75, %76, %cst_34 {dimension_numbers = #tpu.dot_dimension_numbers<[2], [2], [1], [1], [0, 0, 0, 1, 1, 1], [0], [0]>} : vector<2x8x8xbf16>, vector<2x8x8xbf16>, vector<2x8x8xf32> -> vector<2x8x8xf32>
    "tpu.trace_stop"() : () -> ()
    %cst_35 = arith.constant dense<0xFF800000> : vector<2x8xf32>
    %79 = vector.multi_reduction <maximumf>, %78, %cst_35 [2] : vector<2x8x8xf32> to vector<2x8xf32>
    %80 = vector.shape_cast %79 : vector<2x8xf32> to vector<2x8x1xf32>
    %81 = vector.broadcast %80 : vector<2x8x1xf32> to vector<2x8x8xf32>
    %82 = arith.subf %78, %81 : vector<2x8x8xf32>
    %83 = math.exp %82 : vector<2x8x8xf32>
    %cst_36 = arith.constant dense<0.000000e+00> : vector<2x8xf32>
    %84 = vector.multi_reduction <add>, %83, %cst_36 [2] : vector<2x8x8xf32> to vector<2x8xf32>
    %85 = vector.shape_cast %84 : vector<2x8xf32> to vector<2x8x1xf32>
    %86 = arith.truncf %83 : vector<2x8x8xf32> to vector<2x8x8xbf16>
    "tpu.trace_start"() <{level = 10 : i32, message = "bqk,bkd->bqd"}> : () -> ()
    %cst_37 = arith.constant dense<0.000000e+00> : vector<2x8x8xf32>
    %87 = tpu.matmul %86, %77, %cst_37 {dimension_numbers = #tpu.dot_dimension_numbers<[2], [1], [1], [2], [0, 0, 0, 1, 1, 2], [0], [0]>} : vector<2x8x8xbf16>, vector<2x8x8xbf16>, vector<2x8x8xf32> -> vector<2x8x8xf32>
    "tpu.trace_stop"() : () -> ()
    %88 = vector.broadcast %85 : vector<2x8x1xf32> to vector<2x8x8xf32>
    %89 = arith.divf %87, %88 : vector<2x8x8xf32>
    %90 = tpu.concatenate %44, %59, %74, %89 in 2 : vector<2x8x8xf32>, vector<2x8x8xf32>, vector<2x8x8xf32>, vector<2x8x8xf32> -> vector<2x8x32xf32>
    %91 = vector.shape_cast %90 : vector<2x8x32xf32> to vector<16x32xf32>
    %92 = arith.truncf %91 : vector<16x32xf32> to vector<16x32xbf16>
    %c0_38 = arith.constant 0 : index
    %c0_39 = arith.constant 0 : index
    %93 = vector.load %arg10[%c0_38, %c0_39] : memref<32x32xbf16, #tpu.memory_space<vmem>>, vector<32x32xbf16>
    %cst_40 = arith.constant dense<0.000000e+00> : vector<16x32xf32>
    %94 = tpu.matmul %6, %93, %cst_40 {dimension_numbers = #tpu.dot_dimension_numbers<[1], [0], [0], [1], [0, 0, 1, 1], [], []>} : vector<16x32xbf16>, vector<32x32xbf16>, vector<16x32xf32> -> vector<16x32xf32>
    %c0_41 = arith.constant 0 : index
    %c0_42 = arith.constant 0 : index
    %95 = vector.load %arg11[%c0_41, %c0_42] : memref<32x32xbf16, #tpu.memory_space<vmem>>, vector<32x32xbf16>
    %cst_43 = arith.constant dense<0.000000e+00> : vector<16x32xf32>
    %96 = tpu.matmul %92, %95, %cst_43 {dimension_numbers = #tpu.dot_dimension_numbers<[1], [0], [0], [1], [0, 0, 1, 1], [], []>} : vector<16x32xbf16>, vector<32x32xbf16>, vector<16x32xf32> -> vector<16x32xf32>
    %97 = arith.addf %94, %96 : vector<16x32xf32>
    %c0_44 = arith.constant 0 : index
    %c0_45 = arith.constant 0 : index
    %98 = vector.load %arg12[%c0_44, %c0_45] : memref<1x32xf32, #tpu.memory_space<vmem>>, vector<1x32xf32>
    %99 = vector.broadcast %98 : vector<1x32xf32> to vector<16x32xf32>
    %100 = arith.addf %97, %99 : vector<16x32xf32>
    %101 = arith.addf %100, %3 : vector<16x32xf32>
    %cst_46 = arith.constant dense<0.000000e+00> : vector<16xf32>
    %102 = vector.multi_reduction <add>, %101, %cst_46 [1] : vector<16x32xf32> to vector<16xf32>
    %103 = vector.shape_cast %102 : vector<16xf32> to vector<16x1xf32>
    %cst_47 = arith.constant 3.200000e+01 : f32
    %104 = vector.broadcast %cst_47 : f32 to vector<16x1xf32>
    %105 = arith.divf %103, %104 : vector<16x1xf32>
    %106 = vector.broadcast %105 : vector<16x1xf32> to vector<16x32xf32>
    %107 = arith.subf %101, %106 : vector<16x32xf32>
    %108 = arith.mulf %107, %107 : vector<16x32xf32>
    %cst_48 = arith.constant dense<0.000000e+00> : vector<16xf32>
    %109 = vector.multi_reduction <add>, %108, %cst_48 [1] : vector<16x32xf32> to vector<16xf32>
    %110 = vector.shape_cast %109 : vector<16xf32> to vector<16x1xf32>
    %cst_49 = arith.constant 3.200000e+01 : f32
    %111 = vector.broadcast %cst_49 : f32 to vector<16x1xf32>
    %112 = arith.divf %110, %111 : vector<16x1xf32>
    %cst_50 = arith.constant 9.99999974E-6 : f32
    %113 = vector.broadcast %cst_50 : f32 to vector<16x1xf32>
    %114 = arith.addf %112, %113 : vector<16x1xf32>
    %115 = math.rsqrt %114 : vector<16x1xf32>
    %116 = vector.broadcast %115 : vector<16x1xf32> to vector<16x32xf32>
    %117 = arith.mulf %107, %116 : vector<16x32xf32>
    %c0_51 = arith.constant 0 : index
    %c0_52 = arith.constant 0 : index
    %118 = vector.load %arg13[%c0_51, %c0_52] : memref<1x32xf32, #tpu.memory_space<vmem>>, vector<1x32xf32>
    %119 = vector.broadcast %118 : vector<1x32xf32> to vector<16x32xf32>
    %120 = arith.mulf %117, %119 : vector<16x32xf32>
    %c0_53 = arith.constant 0 : index
    %c0_54 = arith.constant 0 : index
    %121 = vector.load %arg14[%c0_53, %c0_54] : memref<1x32xf32, #tpu.memory_space<vmem>>, vector<1x32xf32>
    %122 = vector.broadcast %121 : vector<1x32xf32> to vector<16x32xf32>
    %123 = arith.addf %120, %122 : vector<16x32xf32>
    %124 = vector.shape_cast %123 : vector<16x32xf32> to vector<2x8x32xf32>
    %c0_55 = arith.constant 0 : index
    %c0_56 = arith.constant 0 : index
    %c0_57 = arith.constant 0 : index
    %125 = vector.load %arg15[%c0_55, %c0_56, %c0_57] : memref<2x8x32xf32, #tpu.memory_space<vmem>>, vector<2x8x32xf32>
    tpu.vector_store %arg15[%c0_55, %c0_56, %c0_57], %124 {strides = array<i32>} : memref<2x8x32xf32, #tpu.memory_space<vmem>>, vector<2x8x32xf32>,
    return
  }
  func.func @transform_0(%arg0: i32) -> (i32, i32, i32) {
    %c0_i32 = arith.constant 0 : i32
    %c0_i32_0 = arith.constant 0 : i32
    %c0_i32_1 = arith.constant 0 : i32
    return %arg0, %c0_i32, %c0_i32_0 : i32, i32, i32
  }
  func.func @transform_1(%arg0: i32) -> (i32, i32, i32) {
    %c0_i32 = arith.constant 0 : i32
    %c0_i32_0 = arith.constant 0 : i32
    %c0_i32_1 = arith.constant 0 : i32
    return %arg0, %c0_i32, %c0_i32_0 : i32, i32, i32
  }
  func.func @transform_2(%arg0: i32) -> (i32, i32, i32) {
    %c0_i32 = arith.constant 0 : i32
    %c0_i32_0 = arith.constant 0 : i32
    %c0_i32_1 = arith.constant 0 : i32
    return %arg0, %c0_i32, %c0_i32_0 : i32, i32, i32
  }
  func.func @transform_3(%arg0: i32) -> (i32, i32) {
    %c0_i32 = arith.constant 0 : i32
    %c0_i32_0 = arith.constant 0 : i32
    %c0_i32_1 = arith.constant 0 : i32
    return %c0_i32, %c0_i32_0 : i32, i32
  }
  func.func @transform_4(%arg0: i32) -> (i32, i32) {
    %c0_i32 = arith.constant 0 : i32
    %c0_i32_0 = arith.constant 0 : i32
    %c0_i32_1 = arith.constant 0 : i32
    return %c0_i32, %c0_i32_0 : i32, i32
  }
  func.func @transform_5(%arg0: i32) -> (i32, i32) {
    %c0_i32 = arith.constant 0 : i32
    %c0_i32_0 = arith.constant 0 : i32
    %c0_i32_1 = arith.constant 0 : i32
    return %c0_i32, %c0_i32_0 : i32, i32
  }
  func.func @transform_6(%arg0: i32) -> (i32, i32) {
    %c0_i32 = arith.constant 0 : i32
    %c0_i32_0 = arith.constant 0 : i32
    %c0_i32_1 = arith.constant 0 : i32
    return %c0_i32, %c0_i32_0 : i32, i32
  }
  func.func @transform_7(%arg0: i32) -> (i32, i32) {
    %c0_i32 = arith.constant 0 : i32
    %c0_i32_0 = arith.constant 0 : i32
    %c0_i32_1 = arith.constant 0 : i32
    return %c0_i32, %c0_i32_0 : i32, i32
  }
  func.func @transform_8(%arg0: i32) -> (i32, i32) {
    %c0_i32 = arith.constant 0 : i32
    %c0_i32_0 = arith.constant 0 : i32
    %c0_i32_1 = arith.constant 0 : i32
    return %c0_i32, %c0_i32_0 : i32, i32
  }
  func.func @transform_9(%arg0: i32) -> (i32, i32) {
    %c0_i32 = arith.constant 0 : i32
    %c0_i32_0 = arith.constant 0 : i32
    %c0_i32_1 = arith.constant 0 : i32
    return %c0_i32, %c0_i32_0 : i32, i32
  }
  func.func @transform_10(%arg0: i32) -> (i32, i32) {
    %c0_i32 = arith.constant 0 : i32
    %c0_i32_0 = arith.constant 0 : i32
    %c0_i32_1 = arith.constant 0 : i32
    return %c0_i32, %c0_i32_0 : i32, i32
  }
  func.func @transform_11(%arg0: i32) -> (i32, i32) {
    %c0_i32 = arith.constant 0 : i32
    %c0_i32_0 = arith.constant 0 : i32
    %c0_i32_1 = arith.constant 0 : i32
    return %c0_i32, %c0_i32_0 : i32, i32
  }
  func.func @transform_12(%arg0: i32) -> (i32, i32) {
    %c0_i32 = arith.constant 0 : i32
    %c0_i32_0 = arith.constant 0 : i32
    %c0_i32_1 = arith.constant 0 : i32
    return %c0_i32, %c0_i32_0 : i32, i32
  }
  func.func @transform_13(%arg0: i32) -> (i32, i32) {
    %c0_i32 = arith.constant 0 : i32
    %c0_i32_0 = arith.constant 0 : i32
    %c0_i32_1 = arith.constant 0 : i32
    return %c0_i32, %c0_i32_0 : i32, i32
  }
  func.func @transform_14(%arg0: i32) -> (i32, i32, i32) {
    %c0_i32 = arith.constant 0 : i32
    %c0_i32_0 = arith.constant 0 : i32
    %c0_i32_1 = arith.constant 0 : i32
    return %arg0, %c0_i32, %c0_i32_0 : i32, i32, i32
  }
}

</mosaic_0001>

<llo_original>
// kernel: tpu_custom_call.1
$region0: #{tpu_custom_call.1}
  #allocation0 [shape = 'u32[]', space=smem, size = 0x4, offset = 0x4, fixed_abs, tag = 'smem constant byte address 0x4 - core index']
  #allocation1 [shape = 'u32[144,128]{1,0:T(1,128)}', space=vmem, size = 0x12000, scoped, tag = 'internal scratch']
  %s0 = inlined_call_operand.hbm [shape: f32[2,8,32], index: 0, kind: input, shape index: {}]
  %s1 = inlined_call_operand.hbm [shape: f32[2,8,32], index: 1, kind: input, shape index: {}]
  %s2 = inlined_call_operand.hbm [shape: f32[2,8,32], index: 2, kind: input, shape index: {}]
  %s3 = inlined_call_operand.hbm [shape: bf16[32,32], index: 3, kind: input, shape index: {}]
  %s4 = inlined_call_operand.hbm [shape: bf16[32,32], index: 4, kind: input, shape index: {}]
  %s5 = inlined_call_operand.hbm [shape: bf16[32,32], index: 5, kind: input, shape index: {}]
  %s6 = inlined_call_operand.hbm [shape: f32[1,32], index: 6, kind: input, shape index: {}]
  %s7 = inlined_call_operand.hbm [shape: f32[1,32], index: 7, kind: input, shape index: {}]
  %s8 = inlined_call_operand.hbm [shape: f32[1,32], index: 8, kind: input, shape index: {}]
  %s9 = inlined_call_operand.vmem [shape: bf16[32,32], index: 9, kind: input, shape index: {}]
  %s10 = inlined_call_operand.hbm [shape: bf16[32,32], index: 10, kind: input, shape index: {}]
  %s11 = inlined_call_operand.vmem [shape: f32[1,32], index: 11, kind: input, shape index: {}]
  %s12 = inlined_call_operand.vmem [shape: f32[1,32], index: 12, kind: input, shape index: {}]
  %s13 = inlined_call_operand.vmem [shape: f32[1,32], index: 13, kind: input, shape index: {}]
  %s14 = inlined_call_operand.hbm [shape: f32[2,8,32], index: 14, kind: output, shape index: {}]
  %s15 = sld [smem:[#allocation0]]
  $region106: #{tpu_custom_call.1} parent=0
    _
  %s17 = ssub.s32 1, %s15
  %s18 = scalar_select 0, %s17, %s15
  $region1: #{tpu_custom_call.1} parent=0
    #allocation2 [shape = 'u8[8192]{0}', space=vmem, size = 0x2000, scoped, tag = 'input window, operand 0, single buffered']
    #allocation3 [shape = 's32[1]{0}', space=sflag, size = 0x4, scoped, tag = 'scoped memory for tpu_custom_call.1']
    #allocation4 [shape = 's32[1]{0}', space=sflag, size = 0x4, scoped, tag = 'scoped memory for tpu_custom_call.1']
    #allocation5 [shape = 'u8[8192]{0}', space=vmem, size = 0x2000, scoped, tag = 'input window, operand 1, single buffered']
    #allocation6 [shape = 's32[1]{0}', space=sflag, size = 0x4, scoped, tag = 'scoped memory for tpu_custom_call.1']
    #allocation7 [shape = 'u8[8192]{0}', space=vmem, size = 0x2000, scoped, tag = 'input window, operand 2, single buffered']
    #allocation8 [shape = 'u8[8192]{0}', space=vmem, size = 0x2000, scoped, tag = 'input window, operand 3, single buffered']
    #allocation9 [shape = 's32[1]{0}', space=sflag, size = 0x4, scoped, tag = 'scoped memory for tpu_custom_call.1']
    #allocation10 [shape = 'u8[8192]{0}', space=vmem, size = 0x2000, scoped, tag = 'input window, operand 4, single buffered']
    #allocation11 [shape = 'u8[8192]{0}', space=vmem, size = 0x2000, scoped, tag = 'input window, operand 5, single buffered']
    #allocation12 [shape = 's32[1]{0}', space=sflag, size = 0x4, scoped, tag = 'scoped memory for tpu_custom_call.1']
    #allocation13 [shape = 'u8[512]{0}', space=vmem, size = 0x400, scoped, tag = 'input window, operand 6, single buffered']
    #allocation14 [shape = 'u8[512]{0}', space=vmem, size = 0x400, scoped, tag = 'input window, operand 7, single buffered']
    #allocation15 [shape = 's32[1]{0}', space=sflag, size = 0x4, scoped, tag = 'scoped memory for tpu_custom_call.1']
    #allocation16 [shape = 'u8[512]{0}', space=vmem, size = 0x400, scoped, tag = 'input window, operand 8, single buffered']
    #allocation17 [shape = 'u8[8192]{0}', space=vmem, size = 0x2000, scoped, tag = 'input window, operand 10, single buffered']
    #allocation18 [shape = 's32[1]{0}', space=sflag, size = 0x4, scoped, tag = 'scoped memory for tpu_custom_call.1']
    #allocation19 [shape = 'u8[8192]{0}', space=vmem, size = 0x2000, scoped, tag = 'output window, operand 0, single buffered']
    %19 = vsyncpa [#allocation3], 0
    %20 = vsyncpa [#allocation6], 0
    %21 = vsyncpa [#allocation9], 0
    %22 = vsyncpa [#allocation12], 0
    %23 = vsyncpa [#allocation15], 0
    %24 = vsyncpa [#allocation18], 0
    %25 = vsyncpa [#allocation4], 0
    // Predicated region
    $region2: #{tpu_custom_call.1} parent=1 // pred_check
      _
    $region3: #{tpu_custom_call.1} parent=1 // pred_check_branch
      %27 = sbr.rel (0) target = $region5
    $region4: #{tpu_custom_call.1} parent=1 // pred_region
      %s29 = ssub.s32 256, 256
      %30 = vsyncadd [#allocation3], %s29
      %s31 = sshll.u32 [#allocation2], 4
      %s32 = int_to_ptr.vmem [resolvable:$true] %s31
      %37 = dma.hbm_to_vmem [thread:$0]  %s0, 256, %s32, [#allocation3], 128, 128, 8
    $region5: #{tpu_custom_call.1} parent=1 // pred_fallthru
      _
    // Predicated region
    $region6: #{tpu_custom_call.1} parent=1 // pred_check
      _
    $region7: #{tpu_custom_call.1} parent=1 // pred_check_branch
      %39 = sbr.rel (0) target = $region9
    $region8: #{tpu_custom_call.1} parent=1 // pred_region
      %s41 = ssub.s32 256, 256
      %42 = vsyncadd [#allocation6], %s41
      %s43 = sshll.u32 [#allocation5], 4
      %s44 = int_to_ptr.vmem [resolvable:$true] %s43
      %49 = dma.hbm_to_vmem [thread:$0]  %s1, 256, %s44, [#allocation6], 128, 128, 8
    $region9: #{tpu_custom_call.1} parent=1 // pred_fallthru
      _
    // Predicated region
    $region10: #{tpu_custom_call.1} parent=1 // pred_check
      _
    $region11: #{tpu_custom_call.1} parent=1 // pred_check_branch
      %51 = sbr.rel (0) target = $region13
    $region12: #{tpu_custom_call.1} parent=1 // pred_region
      %s53 = ssub.s32 256, 256
      %54 = vsyncadd [#allocation6], %s53
      %s55 = sshll.u32 [#allocation7], 4
      %s56 = int_to_ptr.vmem [resolvable:$true] %s55
      %61 = dma.hbm_to_vmem [thread:$0]  %s2, 256, %s56, [#allocation6], 128, 128, 8
    $region13: #{tpu_custom_call.1} parent=1 // pred_fallthru
      _
    // Predicated region
    $region14: #{tpu_custom_call.1} parent=1 // pred_check
      _
    $region15: #{tpu_custom_call.1} parent=1 // pred_check_branch
      %63 = sbr.rel (0) target = $region17
    $region16: #{tpu_custom_call.1} parent=1 // pred_region
      %s65 = ssub.s32 256, 256
      %66 = vsyncadd [#allocation9], %s65
      %s67 = sshll.u32 [#allocation8], 4
      %s68 = int_to_ptr.vmem [resolvable:$true] %s67
      %73 = dma.hbm_to_vmem [thread:$0]  %s3, 256, %s68, [#allocation9], 64, 64, 4
    $region17: #{tpu_custom_call.1} parent=1 // pred_fallthru
      _
    // Predicated region
    $region18: #{tpu_custom_call.1} parent=1 // pred_check
      _
    $region19: #{tpu_custom_call.1} parent=1 // pred_check_branch
      %75 = sbr.rel (0) target = $region21
    $region20: #{tpu_custom_call.1} parent=1 // pred_region
      %s77 = ssub.s32 256, 256
      %78 = vsyncadd [#allocation9], %s77
      %s79 = sshll.u32 [#allocation10], 4
      %s80 = int_to_ptr.vmem [resolvable:$true] %s79
      %85 = dma.hbm_to_vmem [thread:$0]  %s4, 256, %s80, [#allocation9], 64, 64, 4
    $region21: #{tpu_custom_call.1} parent=1 // pred_fallthru
      _
    // Predicated region
    $region22: #{tpu_custom_call.1} parent=1 // pred_check
      _
    $region23: #{tpu_custom_call.1} parent=1 // pred_check_branch
      %87 = sbr.rel (0) target = $region25
    $region24: #{tpu_custom_call.1} parent=1 // pred_region
      %s89 = ssub.s32 256, 256
      %90 = vsyncadd [#allocation12], %s89
      %s91 = sshll.u32 [#allocation11], 4
      %s92 = int_to_ptr.vmem [resolvable:$true] %s91
      %97 = dma.hbm_to_vmem [thread:$0]  %s5, 256, %s92, [#allocation12], 64, 64, 4
    $region25: #{tpu_custom_call.1} parent=1 // pred_fallthru
      _
    // Predicated region
    $region26: #{tpu_custom_call.1} parent=1 // pred_check
      _
    $region27: #{tpu_custom_call.1} parent=1 // pred_check_branch
      %99 = sbr.rel (0) target = $region29
    $region28: #{tpu_custom_call.1} parent=1 // pred_region
      %s101 = ssub.s32 16, 16
      %102 = vsyncadd [#allocation12], %s101
      %s104 = sshll.u32 [#allocation13], 4
      %s105 = int_to_ptr.vmem [resolvable:$true] %s104
      %107 = dma.hbm_to_vmem [thread:$0]  %s6, 16, %s105, [#allocation12]
    $region29: #{tpu_custom_call.1} parent=1 // pred_fallthru
      _
    // Predicated region
    $region30: #{tpu_custom_call.1} parent=1 // pred_check
      _
    $region31: #{tpu_custom_call.1} parent=1 // pred_check_branch
      %109 = sbr.rel (0) target = $region33
    $region32: #{tpu_custom_call.1} parent=1 // pred_region
      %s111 = ssub.s32 16, 16
      %112 = vsyncadd [#allocation15], %s111
      %s114 = sshll.u32 [#allocation14], 4
      %s115 = int_to_ptr.vmem [resolvable:$true] %s114
      %117 = dma.hbm_to_vmem [thread:$0]  %s7, 16, %s115, [#allocation15]
    $region33: #{tpu_custom_call.1} parent=1 // pred_fallthru
      _
    // Predicated region
    $region34: #{tpu_custom_call.1} parent=1 // pred_check
      _
    $region35: #{tpu_custom_call.1} parent=1 // pred_check_branch
      %119 = sbr.rel (0) target = $region37
    $region36: #{tpu_custom_call.1} parent=1 // pred_region
      %s121 = ssub.s32 16, 16
      %122 = vsyncadd [#allocation15], %s121
      %s124 = sshll.u32 [#allocation16], 4
      %s125 = int_to_ptr.vmem [resolvable:$true] %s124
      %127 = dma.hbm_to_vmem [thread:$0]  %s8, 16, %s125, [#allocation15]
    $region37: #{tpu_custom_call.1} parent=1 // pred_fallthru
      _
    // Predicated region
    $region38: #{tpu_custom_call.1} parent=1 // pred_check
      _
    $region39: #{tpu_custom_call.1} parent=1 // pred_check_branch
      %129 = sbr.rel (0) target = $region41
    $region40: #{tpu_custom_call.1} parent=1 // pred_region
      _
    $region41: #{tpu_custom_call.1} parent=1 // pred_fallthru
      _
    // Predicated region
    $region42: #{tpu_custom_call.1} parent=1 // pred_check
      _
    $region43: #{tpu_custom_call.1} parent=1 // pred_check_branch
      %131 = sbr.rel (0) target = $region45
    $region44: #{tpu_custom_call.1} parent=1 // pred_region
      %s133 = ssub.s32 256, 256
      %134 = vsyncadd [#allocation18], %s133
      %s135 = sshll.u32 [#allocation17], 4
      %s136 = int_to_ptr.vmem [resolvable:$true] %s135
      %141 = dma.hbm_to_vmem [thread:$0]  %s10, 256, %s136, [#allocation18], 64, 64, 4
    $region45: #{tpu_custom_call.1} parent=1 // pred_fallthru
      _
    // Predicated region
    $region46: #{tpu_custom_call.1} parent=1 // pred_check
      _
    $region47: #{tpu_custom_call.1} parent=1 // pred_check_branch
      %143 = sbr.rel (0) target = $region49
    $region48: #{tpu_custom_call.1} parent=1 // pred_region
      _
    $region49: #{tpu_custom_call.1} parent=1 // pred_fallthru
      _
    // Predicated region
    $region50: #{tpu_custom_call.1} parent=1 // pred_check
      _
    $region51: #{tpu_custom_call.1} parent=1 // pred_check_branch
      %145 = sbr.rel (0) target = $region53
    $region52: #{tpu_custom_call.1} parent=1 // pred_region
      _
    $region53: #{tpu_custom_call.1} parent=1 // pred_fallthru
      _
    // Predicated region
    $region54: #{tpu_custom_call.1} parent=1 // pred_check
      _
    $region55: #{tpu_custom_call.1} parent=1 // pred_check_branch
      %147 = sbr.rel (0) target = $region57
    $region56: #{tpu_custom_call.1} parent=1 // pred_region
      _
    $region57: #{tpu_custom_call.1} parent=1 // pred_fallthru
      _
    // Predicated region
    $region58: #{tpu_custom_call.1} parent=1 // pred_check
      _
    $region59: #{tpu_custom_call.1} parent=1 // pred_check_branch
      %149 = sbr.rel (0) target = $region61
    $region60: #{tpu_custom_call.1} parent=1 // pred_region
      %150 = dma.done [#allocation3], 256
    $region61: #{tpu_custom_call.1} parent=1 // pred_fallthru
      _
    // Predicated region
    $region62: #{tpu_custom_call.1} parent=1 // pred_check
      _
    $region63: #{tpu_custom_call.1} parent=1 // pred_check_branch
      %152 = sbr.rel (0) target = $region65
    $region64: #{tpu_custom_call.1} parent=1 // pred_region
      %153 = dma.done [#allocation6], 256
    $region65: #{tpu_custom_call.1} parent=1 // pred_fallthru
      _
    // Predicated region
    $region66: #{tpu_custom_call.1} parent=1 // pred_check
      _
    $region67: #{tpu_custom_call.1} parent=1 // pred_check_branch
      %155 = sbr.rel (0) target = $region69
    $region68: #{tpu_custom_call.1} parent=1 // pred_region
      %156 = dma.done [#allocation6], 256
    $region69: #{tpu_custom_call.1} parent=1 // pred_fallthru
      _
    // Predicated region
    $region70: #{tpu_custom_call.1} parent=1 // pred_check
      _
    $region71: #{tpu_custom_call.1} parent=1 // pred_check_branch
      %158 = sbr.rel (0) target = $region73
    $region72: #{tpu_custom_call.1} parent=1 // pred_region
      %159 = dma.done [#allocation9], 256
    $region73: #{tpu_custom_call.1} parent=1 // pred_fallthru
      _
    // Predicated region
    $region74: #{tpu_custom_call.1} parent=1 // pred_check
      _
    $region75: #{tpu_custom_call.1} parent=1 // pred_check_branch
      %161 = sbr.rel (0) target = $region77
    $region76: #{tpu_custom_call.1} parent=1 // pred_region
      %162 = dma.done [#allocation9], 256
    $region77: #{tpu_custom_call.1} parent=1 // pred_fallthru
      _
    // Predicated region
    $region78: #{tpu_custom_call.1} parent=1 // pred_check
      _
    $region79: #{tpu_custom_call.1} parent=1 // pred_check_branch
      %164 = sbr.rel (0) target = $region81
    $region80: #{tpu_custom_call.1} parent=1 // pred_region
      %165 = dma.done [#allocation12], 256
    $region81: #{tpu_custom_call.1} parent=1 // pred_fallthru
      _
    // Predicated region
    $region82: #{tpu_custom_call.1} parent=1 // pred_check
      _
    $region83: #{tpu_custom_call.1} parent=1 // pred_check_branch
      %167 = sbr.rel (0) target = $region85
    $region84: #{tpu_custom_call.1} parent=1 // pred_region
      %168 = dma.done [#allocation12], 16
    $region85: #{tpu_custom_call.1} parent=1 // pred_fallthru
      _
    // Predicated region
    $region86: #{tpu_custom_call.1} parent=1 // pred_check
      _
    $region87: #{tpu_custom_call.1} parent=1 // pred_check_branch
      %170 = sbr.rel (0) target = $region89
    $region88: #{tpu_custom_call.1} parent=1 // pred_region
      %171 = dma.done [#allocation15], 16
    $region89: #{tpu_custom_call.1} parent=1 // pred_fallthru
      _
    // Predicated region
    $region90: #{tpu_custom_call.1} parent=1 // pred_check
      _
    $region91: #{tpu_custom_call.1} parent=1 // pred_check_branch
      %173 = sbr.rel (0) target = $region93
    $region92: #{tpu_custom_call.1} parent=1 // pred_region
      %174 = dma.done [#allocation15], 16
    $region93: #{tpu_custom_call.1} parent=1 // pred_fallthru
      _
    // Predicated region
    $region94: #{tpu_custom_call.1} parent=1 // pred_check
      _
    $region95: #{tpu_custom_call.1} parent=1 // pred_check_branch
      %176 = sbr.rel (0) target = $region97
    $region96: #{tpu_custom_call.1} parent=1 // pred_region
      %177 = dma.done [#allocation18], 256
    $region97: #{tpu_custom_call.1} parent=1 // pred_fallthru
      _
    %v179 = vld [vmem:[#allocation2] sm:$0xff]
    %v180 = vld [vmem:[#allocation2 + $0x8] sm:$0xff]
    %v181 = vld [vmem:[#allocation5] sm:$0xff]
    %v182 = vld [vmem:[#allocation5 + $0x8] sm:$0xff]
    %v183 = vld [vmem:[#allocation7] sm:$0xff]
    %v184 = vld [vmem:[#allocation7 + $0x8] sm:$0xff]
    %v185 = vpack.c.bf16 %v180, %v179
    %v186 = vpack.c.bf16 %v182, %v181
    %v187 = vpack.c.bf16 %v184, %v183
    %v188 = vld [vmem:[#allocation8] sm:$0xf]
    %v189 = vld [vmem:[#allocation8 + $0x4] sm:$0xf]
    %v190 = vld [vmem:[#allocation8 + $0x8] sm:$0xf]
    %v191 = vld [vmem:[#allocation8 + $0xc] sm:$0xf]
    %v192 = vld [vmem:[#allocation13] sm:$0x1]
    %v194 = vlaneseq
    %v195 = vshrl.u32 %v194, 7
    %v196 = vsub.s32 0, %v195
    %v197 = vrot.slane %v192, %v196
    %v203 = vunpack.c.l.b16 %v188
    %v204 = vunpack.c.l.b16 %v189
    %v205 = vunpack.c.l.b16 %v190
    %v206 = vunpack.c.l.b16 %v191
    %v207 = vpack.c.b16 %v204, %v203
    %v208 = vpack.c.b16 %v206, %v205
    %vm211 = vcmask 261120
    %v213 = vsel %vm211, %v185, 0
    %215 = vmatprep.subr.bf16.mxu0 0
    %216 = vmatpush1.bf16.msra.mxu0 0
    %217 = vmatprep.subr.bf16.mxu0 0
    %218 = vmatpush1.bf16.msra.mxu0 0
    %219 = vmatprep.subr.bf16.mxu0 0
    %220 = vmatpush1.bf16.msra.mxu0 0
    %221 = vmatprep.subr.bf16.mxu0 0
    %222 = vmatpush1.bf16.msra.mxu0 0
    %223 = vmatprep.subr.bf16.mxu0 0
    %224 = vmatpush1.bf16.msra.mxu0 0
    %225 = vmatprep.subr.bf16.mxu0 0
    %226 = vmatpush1.bf16.msra.mxu0 0
    %227 = vmatprep.subr.bf16.mxu0 0
    %228 = vmatpush1.bf16.msra.mxu0 %v208
    %229 = vmatprep.subr.bf16.mxu0 0
    %230 = vmatpush1.bf16.msra.mxu0 %v207
    %231 = vmatprep.subr.bf16.mxu0 0
    %232 = vmatpush2.bf16.msra.mxu0 0
    %233 = vmatprep.subr.bf16.mxu0 0
    %234 = vmatpush2.bf16.msra.mxu0 0
    %235 = vmatprep.subr.bf16.mxu0 0
    %236 = vmatpush2.bf16.msra.mxu0 0
    %237 = vmatprep.subr.bf16.mxu0 0
    %238 = vmatpush2.bf16.msra.mxu0 0
    %239 = vmatprep.subr.bf16.mxu0 0
    %240 = vmatpush2.bf16.msra.mxu0 0
    %241 = vmatprep.subr.bf16.mxu0 0
    %242 = vmatpush2.bf16.msra.mxu0 0
    %243 = vmatprep.subr.bf16.mxu0 0
    %244 = vmatpush2.bf16.msra.mxu0 0
    %245 = vmatprep.subr.bf16.mxu0 0
    %246 = vmatpush2.bf16.msra.mxu0 0
    %247 = vmatprep.mubr.bf16.mxu0 0
    %248 = vmatmul.mubr.bf16.gmra.mxu0 %v213
    %v249 = vpop.f32.mrf.mxu0
    %v250 = vadd.f32 %v197, %v249
    %v251 = vpop.f32.mrf.mxu0
    %v252 = vpop.f32.mrf.mxu0
    %v253 = vadd.f32 %v197, %v252
    %v254 = vpop.f32.mrf.mxu0
    %255 = vdwg.mxu0
    %v256 = vld [vmem:[#allocation10] sm:$0xf]
    %v257 = vld [vmem:[#allocation10 + $0x4] sm:$0xf]
    %v258 = vld [vmem:[#allocation10 + $0x8] sm:$0xf]
    %v259 = vld [vmem:[#allocation10 + $0xc] sm:$0xf]
    %v260 = vld [vmem:[#allocation14] sm:$0x1]
    %v262 = vlaneseq
    %v263 = vshrl.u32 %v262, 7
    %v264 = vsub.s32 0, %v263
    %v265 = vrot.slane %v260, %v264
    %v271 = vunpack.c.l.b16 %v256
    %v272 = vunpack.c.l.b16 %v257
    %v273 = vunpack.c.l.b16 %v258
    %v274 = vunpack.c.l.b16 %v259
    %v275 = vpack.c.b16 %v272, %v271
    %v276 = vpack.c.b16 %v274, %v273
    %v280 = vsel %vm211, %v186, 0
    %282 = vmatprep.subr.bf16.mxu0 0
    %283 = vmatpush1.bf16.msra.mxu0 0
    %284 = vmatprep.subr.bf16.mxu0 0
    %285 = vmatpush1.bf16.msra.mxu0 0
    %286 = vmatprep.subr.bf16.mxu0 0
    %287 = vmatpush1.bf16.msra.mxu0 0
    %288 = vmatprep.subr.bf16.mxu0 0
    %289 = vmatpush1.bf16.msra.mxu0 0
    %290 = vmatprep.subr.bf16.mxu0 0
    %291 = vmatpush1.bf16.msra.mxu0 0
    %292 = vmatprep.subr.bf16.mxu0 0
    %293 = vmatpush1.bf16.msra.mxu0 0
    %294 = vmatprep.subr.bf16.mxu0 0
    %295 = vmatpush1.bf16.msra.mxu0 %v276
    %296 = vmatprep.subr.bf16.mxu0 0
    %297 = vmatpush1.bf16.msra.mxu0 %v275
    %298 = vmatprep.subr.bf16.mxu0 0
    %299 = vmatpush2.bf16.msra.mxu0 0
    %300 = vmatprep.subr.bf16.mxu0 0
    %301 = vmatpush2.bf16.msra.mxu0 0
    %302 = vmatprep.subr.bf16.mxu0 0
    %303 = vmatpush2.bf16.msra.mxu0 0
    %304 = vmatprep.subr.bf16.mxu0 0
    %305 = vmatpush2.bf16.msra.mxu0 0
    %306 = vmatprep.subr.bf16.mxu0 0
    %307 = vmatpush2.bf16.msra.mxu0 0
    %308 = vmatprep.subr.bf16.mxu0 0
    %309 = vmatpush2.bf16.msra.mxu0 0
    %310 = vmatprep.subr.bf16.mxu0 0
    %311 = vmatpush2.bf16.msra.mxu0 0
    %312 = vmatprep.subr.bf16.mxu0 0
    %313 = vmatpush2.bf16.msra.mxu0 0
    %314 = vmatprep.mubr.bf16.mxu0 0
    %315 = vmatmul.mubr.bf16.gmra.mxu0 %v280
    %v316 = vpop.f32.mrf.mxu0
    %v317 = vadd.f32 %v265, %v316
    %v318 = vpop.f32.mrf.mxu0
    %v319 = vpop.f32.mrf.mxu0
    %v320 = vadd.f32 %v265, %v319
    %v321 = vpop.f32.mrf.mxu0
    %322 = vdwg.mxu0
    %v323 = vld [vmem:[#allocation11] sm:$0xf]
    %v324 = vld [vmem:[#allocation11 + $0x4] sm:$0xf]
    %v325 = vld [vmem:[#allocation11 + $0x8] sm:$0xf]
    %v326 = vld [vmem:[#allocation11 + $0xc] sm:$0xf]
    %v327 = vld [vmem:[#allocation16] sm:$0x1]
    %v329 = vlaneseq
    %v330 = vshrl.u32 %v329, 7
    %v331 = vsub.s32 0, %v330
    %v332 = vrot.slane %v327, %v331
    %v338 = vunpack.c.l.b16 %v323
    %v339 = vunpack.c.l.b16 %v324
    %v340 = vunpack.c.l.b16 %v325
    %v341 = vunpack.c.l.b16 %v326
    %v342 = vpack.c.b16 %v339, %v338
    %v343 = vpack.c.b16 %v341, %v340
    %v347 = vsel %vm211, %v187, 0
    %349 = vmatprep.subr.bf16.mxu0 0
    %350 = vmatpush1.bf16.msra.mxu0 0
    %351 = vmatprep.subr.bf16.mxu0 0
    %352 = vmatpush1.bf16.msra.mxu0 0
    %353 = vmatprep.subr.bf16.mxu0 0
    %354 = vmatpush1.bf16.msra.mxu0 0
    %355 = vmatprep.subr.bf16.mxu0 0
    %356 = vmatpush1.bf16.msra.mxu0 0
    %357 = vmatprep.subr.bf16.mxu0 0
    %358 = vmatpush1.bf16.msra.mxu0 0
    %359 = vmatprep.subr.bf16.mxu0 0
    %360 = vmatpush1.bf16.msra.mxu0 0
    %361 = vmatprep.subr.bf16.mxu0 0
    %362 = vmatpush1.bf16.msra.mxu0 %v343
    %363 = vmatprep.subr.bf16.mxu0 0
    %364 = vmatpush1.bf16.msra.mxu0 %v342
    %365 = vmatprep.subr.bf16.mxu0 0
    %366 = vmatpush2.bf16.msra.mxu0 0
    %367 = vmatprep.subr.bf16.mxu0 0
    %368 = vmatpush2.bf16.msra.mxu0 0
    %369 = vmatprep.subr.bf16.mxu0 0
    %370 = vmatpush2.bf16.msra.mxu0 0
    %371 = vmatprep.subr.bf16.mxu0 0
    %372 = vmatpush2.bf16.msra.mxu0 0
    %373 = vmatprep.subr.bf16.mxu0 0
    %374 = vmatpush2.bf16.msra.mxu0 0
    %375 = vmatprep.subr.bf16.mxu0 0
    %376 = vmatpush2.bf16.msra.mxu0 0
    %377 = vmatprep.subr.bf16.mxu0 0
    %378 = vmatpush2.bf16.msra.mxu0 0
    %379 = vmatprep.subr.bf16.mxu0 0
    %380 = vmatpush2.bf16.msra.mxu0 0
    %381 = vmatprep.mubr.bf16.mxu0 0
    %382 = vmatmul.mubr.bf16.gmra.mxu0 %v347
    %v383 = vpop.f32.mrf.mxu0
    %v384 = vadd.f32 %v332, %v383
    %v385 = vpop.f32.mrf.mxu0
    %v386 = vpop.f32.mrf.mxu0
    %v387 = vadd.f32 %v332, %v386
    %v388 = vpop.f32.mrf.mxu0
    %389 = vdwg.mxu0
    %v390 = vpack.c.bf16 %v250, %v250
    %v391 = vpack.c.bf16 %v253, %v253
    %v392 = vpack.c.bf16 %v317, %v317
    %v393 = vpack.c.bf16 %v320, %v320
    %v394 = vpack.c.bf16 %v384, %v384
    %v395 = vpack.c.bf16 %v387, %v387
    %vm396 = vcmask 64512
    %v398 = vsel %vm396, %v390, 0
    %v401 = vsel %vm396, %v392, 0
    %403 = vmatprep.subr.bf16.mxu0 0
    %404 = vmatpush1.bf16.xpose.msra.mxu0 0
    %405 = vmatprep.subr.bf16.mxu0 0
    %406 = vmatpush1.bf16.xpose.msra.mxu0 0
    %407 = vmatprep.subr.bf16.mxu0 0
    %408 = vmatpush1.bf16.xpose.msra.mxu0 0
    %409 = vmatprep.subr.bf16.mxu0 0
    %410 = vmatpush1.bf16.xpose.msra.mxu0 0
    %411 = vmatprep.subr.bf16.mxu0 0
    %412 = vmatpush1.bf16.xpose.msra.mxu0 0
    %413 = vmatprep.subr.bf16.mxu0 0
    %414 = vmatpush1.bf16.xpose.msra.mxu0 0
    %415 = vmatprep.subr.bf16.mxu0 0
    %416 = vmatpush1.bf16.xpose.msra.mxu0 0
    %417 = vmatprep.subr.bf16.mxu0 0
    %418 = vmatpush1.bf16.xpose.msra.mxu0 %v401
    %419 = vmatprep.subr.bf16.mxu0 0
    %420 = vmatpush2.bf16.xpose.msra.mxu0 0
    %421 = vmatprep.subr.bf16.mxu0 0
    %422 = vmatpush2.bf16.xpose.msra.mxu0 0
    %423 = vmatprep.subr.bf16.mxu0 0
    %424 = vmatpush2.bf16.xpose.msra.mxu0 0
    %425 = vmatprep.subr.bf16.mxu0 0
    %426 = vmatpush2.bf16.xpose.msra.mxu0 0
    %427 = vmatprep.subr.bf16.mxu0 0
    %428 = vmatpush2.bf16.xpose.msra.mxu0 0
    %429 = vmatprep.subr.bf16.mxu0 0
    %430 = vmatpush2.bf16.xpose.msra.mxu0 0
    %431 = vmatprep.subr.bf16.mxu0 0
    %432 = vmatpush2.bf16.xpose.msra.mxu0 0
    %433 = vmatprep.subr.bf16.mxu0 0
    %434 = vmatpush2.bf16.xpose.msra.mxu0 0
    %435 = vmatprep.mubr.bf16.mxu0 0
    %436 = vmatmul.mubr.bf16.gmra.mxu0 %v398
    %v437 = vpop.f32.mrf.mxu0
    %v438 = vadd.f32 0.0, %v437
    %v439 = vpop.f32.mrf.mxu0
    %v440 = vpop.f32.mrf.mxu0
    %v441 = vpop.f32.mrf.mxu0
    %442 = vdwg.mxu0
    %v444 = vsel %vm396, %v391, 0
    %v447 = vsel %vm396, %v393, 0
    %449 = vmatprep.subr.bf16.mxu0 0
    %450 = vmatpush1.bf16.xpose.msra.mxu0 0
    %451 = vmatprep.subr.bf16.mxu0 0
    %452 = vmatpush1.bf16.xpose.msra.mxu0 0
    %453 = vmatprep.subr.bf16.mxu0 0
    %454 = vmatpush1.bf16.xpose.msra.mxu0 0
    %455 = vmatprep.subr.bf16.mxu0 0
    %456 = vmatpush1.bf16.xpose.msra.mxu0 0
    %457 = vmatprep.subr.bf16.mxu0 0
    %458 = vmatpush1.bf16.xpose.msra.mxu0 0
    %459 = vmatprep.subr.bf16.mxu0 0
    %460 = vmatpush1.bf16.xpose.msra.mxu0 0
    %461 = vmatprep.subr.bf16.mxu0 0
    %462 = vmatpush1.bf16.xpose.msra.mxu0 0
    %463 = vmatprep.subr.bf16.mxu0 0
    %464 = vmatpush1.bf16.xpose.msra.mxu0 %v447
    %465 = vmatprep.subr.bf16.mxu0 0
    %466 = vmatpush2.bf16.xpose.msra.mxu0 0
    %467 = vmatprep.subr.bf16.mxu0 0
    %468 = vmatpush2.bf16.xpose.msra.mxu0 0
    %469 = vmatprep.subr.bf16.mxu0 0
    %470 = vmatpush2.bf16.xpose.msra.mxu0 0
    %471 = vmatprep.subr.bf16.mxu0 0
    %472 = vmatpush2.bf16.xpose.msra.mxu0 0
    %473 = vmatprep.subr.bf16.mxu0 0
    %474 = vmatpush2.bf16.xpose.msra.mxu0 0
    %475 = vmatprep.subr.bf16.mxu0 0
    %476 = vmatpush2.bf16.xpose.msra.mxu0 0
    %477 = vmatprep.subr.bf16.mxu0 0
    %478 = vmatpush2.bf16.xpose.msra.mxu0 0
    %479 = vmatprep.subr.bf16.mxu0 0
    %480 = vmatpush2.bf16.xpose.msra.mxu0 0
    %481 = vmatprep.mubr.bf16.mxu0 0
    %482 = vmatmul.mubr.bf16.gmra.mxu0 %v444
    %v483 = vpop.f32.mrf.mxu0
    %v484 = vadd.f32 0.0, %v483
    %v485 = vpop.f32.mrf.mxu0
    %v486 = vpop.f32.mrf.mxu0
    %v487 = vpop.f32.mrf.mxu0
    %488 = vdwg.mxu0
    %v489 = vsel %vm396, %v438, -inf
    %490 = vmax.xlane.f32.xlu0 %v489
    %v491 = vpop.xlane.xlu0 %490
    %v492 = vsel %vm396, %v484, -inf
    %493 = vmax.xlane.f32.xlu0 %v492
    %v494 = vpop.xlane.xlu0 %493
    %v495 = vsub.f32 %v438, %v491
    %v496 = vsub.f32 %v484, %v494
    %v497 = vmul.f32 %v495, 1.442695
    %v498 = vpow.pop %v497
    %v499 = vmul.f32 %v496, 1.442695
    %v500 = vpow.pop %v499
    %v501 = vsel %vm396, %v498, 0.0
    %502 = vadd.xlane.f32.xlu0 %v501
    %v503 = vpop.xlane.xlu0 %502
    %v504 = vsel %vm396, %v500, 0.0
    %505 = vadd.xlane.f32.xlu0 %v504
    %v506 = vpop.xlane.xlu0 %505
    %v507 = vpack.c.bf16 %v498, %v498
    %v508 = vpack.c.bf16 %v500, %v500
    %v510 = vsel %vm396, %v507, 0
    %vm512 = vcmask 1043456
    %v514 = vsel %vm512, %v394, 0
    %516 = vmatprep.subr.bf16.mxu0 0
    %517 = vmatpush1.bf16.msra.mxu0 0
    %518 = vmatprep.subr.bf16.mxu0 0
    %519 = vmatpush1.bf16.msra.mxu0 0
    %520 = vmatprep.subr.bf16.mxu0 0
    %521 = vmatpush1.bf16.msra.mxu0 0
    %522 = vmatprep.subr.bf16.mxu0 0
    %523 = vmatpush1.bf16.msra.mxu0 0
    %524 = vmatprep.subr.bf16.mxu0 0
    %525 = vmatpush1.bf16.msra.mxu0 0
    %526 = vmatprep.subr.bf16.mxu0 0
    %527 = vmatpush1.bf16.msra.mxu0 0
    %528 = vmatprep.subr.bf16.mxu0 0
    %529 = vmatpush1.bf16.msra.mxu0 0
    %530 = vmatprep.subr.bf16.mxu0 0
    %531 = vmatpush1.bf16.msra.mxu0 %v514
    %532 = vmatprep.subr.bf16.mxu0 0
    %533 = vmatpush2.bf16.msra.mxu0 0
    %534 = vmatprep.subr.bf16.mxu0 0
    %535 = vmatpush2.bf16.msra.mxu0 0
    %536 = vmatprep.subr.bf16.mxu0 0
    %537 = vmatpush2.bf16.msra.mxu0 0
    %538 = vmatprep.subr.bf16.mxu0 0
    %539 = vmatpush2.bf16.msra.mxu0 0
    %540 = vmatprep.subr.bf16.mxu0 0
    %541 = vmatpush2.bf16.msra.mxu0 0
    %542 = vmatprep.subr.bf16.mxu0 0
    %543 = vmatpush2.bf16.msra.mxu0 0
    %544 = vmatprep.subr.bf16.mxu0 0
    %545 = vmatpush2.bf16.msra.mxu0 0
    %546 = vmatprep.subr.bf16.mxu0 0
    %547 = vmatpush2.bf16.msra.mxu0 0
    %548 = vmatprep.mubr.bf16.mxu0 0
    %549 = vmatmul.mubr.bf16.gmra.mxu0 %v510
    %v550 = vpop.f32.mrf.mxu0
    %v551 = vadd.f32 0.0, %v550
    %v552 = vpop.f32.mrf.mxu0
    %v553 = vpop.f32.mrf.mxu0
    %v554 = vpop.f32.mrf.mxu0
    %555 = vdwg.mxu0
    %v557 = vsel %vm396, %v508, 0
    %v560 = vsel %vm512, %v395, 0
    %562 = vmatprep.subr.bf16.mxu0 0
    %563 = vmatpush1.bf16.msra.mxu0 0
    %564 = vmatprep.subr.bf16.mxu0 0
    %565 = vmatpush1.bf16.msra.mxu0 0
    %566 = vmatprep.subr.bf16.mxu0 0
    %567 = vmatpush1.bf16.msra.mxu0 0
    %568 = vmatprep.subr.bf16.mxu0 0
    %569 = vmatpush1.bf16.msra.mxu0 0
    %570 = vmatprep.subr.bf16.mxu0 0
    %571 = vmatpush1.bf16.msra.mxu0 0
    %572 = vmatprep.subr.bf16.mxu0 0
    %573 = vmatpush1.bf16.msra.mxu0 0
    %574 = vmatprep.subr.bf16.mxu0 0
    %575 = vmatpush1.bf16.msra.mxu0 0
    %576 = vmatprep.subr.bf16.mxu0 0
    %577 = vmatpush1.bf16.msra.mxu0 %v560
    %578 = vmatprep.subr.bf16.mxu0 0
    %579 = vmatpush2.bf16.msra.mxu0 0
    %580 = vmatprep.subr.bf16.mxu0 0
    %581 = vmatpush2.bf16.msra.mxu0 0
    %582 = vmatprep.subr.bf16.mxu0 0
    %583 = vmatpush2.bf16.msra.mxu0 0
    %584 = vmatprep.subr.bf16.mxu0 0
    %585 = vmatpush2.bf16.msra.mxu0 0
    %586 = vmatprep.subr.bf16.mxu0 0
    %587 = vmatpush2.bf16.msra.mxu0 0
    %588 = vmatprep.subr.bf16.mxu0 0
    %589 = vmatpush2.bf16.msra.mxu0 0
    %590 = vmatprep.subr.bf16.mxu0 0
    %591 = vmatpush2.bf16.msra.mxu0 0
    %592 = vmatprep.subr.bf16.mxu0 0
    %593 = vmatpush2.bf16.msra.mxu0 0
    %594 = vmatprep.mubr.bf16.mxu0 0
    %595 = vmatmul.mubr.bf16.gmra.mxu0 %v557
    %v596 = vpop.f32.mrf.mxu0
    %v597 = vadd.f32 0.0, %v596
    %v598 = vpop.f32.mrf.mxu0
    %v599 = vpop.f32.mrf.mxu0
    %v600 = vpop.f32.mrf.mxu0
    %601 = vdwg.mxu0
    %v602 = vrcp.pop %v503
    %v603 = vmul.f32 %v551, %v602
    %v604 = vrcp.pop %v506
    %v605 = vmul.f32 %v597, %v604
    %607 = vrot.lane.b32.xlu0 %v390, 120
    %v608 = vpop.permute.xlu0 %607
    %610 = vrot.lane.b32.xlu0 %v392, 120
    %v611 = vpop.permute.xlu0 %610
    %v613 = vsel %vm396, %v608, 0
    %v616 = vsel %vm396, %v611, 0
    %618 = vmatprep.subr.bf16.mxu0 0
    %619 = vmatpush1.bf16.xpose.msra.mxu0 0
    %620 = vmatprep.subr.bf16.mxu0 0
    %621 = vmatpush1.bf16.xpose.msra.mxu0 0
    %622 = vmatprep.subr.bf16.mxu0 0
    %623 = vmatpush1.bf16.xpose.msra.mxu0 0
    %624 = vmatprep.subr.bf16.mxu0 0
    %625 = vmatpush1.bf16.xpose.msra.mxu0 0
    %626 = vmatprep.subr.bf16.mxu0 0
    %627 = vmatpush1.bf16.xpose.msra.mxu0 0
    %628 = vmatprep.subr.bf16.mxu0 0
    %629 = vmatpush1.bf16.xpose.msra.mxu0 0
    %630 = vmatprep.subr.bf16.mxu0 0
    %631 = vmatpush1.bf16.xpose.msra.mxu0 0
    %632 = vmatprep.subr.bf16.mxu0 0
    %633 = vmatpush1.bf16.xpose.msra.mxu0 %v616
    %634 = vmatprep.subr.bf16.mxu0 0
    %635 = vmatpush2.bf16.xpose.msra.mxu0 0
    %636 = vmatprep.subr.bf16.mxu0 0
    %637 = vmatpush2.bf16.xpose.msra.mxu0 0
    %638 = vmatprep.subr.bf16.mxu0 0
    %639 = vmatpush2.bf16.xpose.msra.mxu0 0
    %640 = vmatprep.subr.bf16.mxu0 0
    %641 = vmatpush2.bf16.xpose.msra.mxu0 0
    %642 = vmatprep.subr.bf16.mxu0 0
    %643 = vmatpush2.bf16.xpose.msra.mxu0 0
    %644 = vmatprep.subr.bf16.mxu0 0
    %645 = vmatpush2.bf16.xpose.msra.mxu0 0
    %646 = vmatprep.subr.bf16.mxu0 0
    %647 = vmatpush2.bf16.xpose.msra.mxu0 0
    %648 = vmatprep.subr.bf16.mxu0 0
    %649 = vmatpush2.bf16.xpose.msra.mxu0 0
    %650 = vmatprep.mubr.bf16.mxu0 0
    %651 = vmatmul.mubr.bf16.gmra.mxu0 %v613
    %v652 = vpop.f32.mrf.mxu0
    %v653 = vadd.f32 0.0, %v652
    %v654 = vpop.f32.mrf.mxu0
    %v655 = vpop.f32.mrf.mxu0
    %v656 = vpop.f32.mrf.mxu0
    %657 = vdwg.mxu0
    %659 = vrot.lane.b32.xlu0 %v391, 120
    %v660 = vpop.permute.xlu0 %659
    %662 = vrot.lane.b32.xlu0 %v393, 120
    %v663 = vpop.permute.xlu0 %662
    %v665 = vsel %vm396, %v660, 0
    %v668 = vsel %vm396, %v663, 0
    %670 = vmatprep.subr.bf16.mxu0 0
    %671 = vmatpush1.bf16.xpose.msra.mxu0 0
    %672 = vmatprep.subr.bf16.mxu0 0
    %673 = vmatpush1.bf16.xpose.msra.mxu0 0
    %674 = vmatprep.subr.bf16.mxu0 0
    %675 = vmatpush1.bf16.xpose.msra.mxu0 0
    %676 = vmatprep.subr.bf16.mxu0 0
    %677 = vmatpush1.bf16.xpose.msra.mxu0 0
    %678 = vmatprep.subr.bf16.mxu0 0
    %679 = vmatpush1.bf16.xpose.msra.mxu0 0
    %680 = vmatprep.subr.bf16.mxu0 0
    %681 = vmatpush1.bf16.xpose.msra.mxu0 0
    %682 = vmatprep.subr.bf16.mxu0 0
    %683 = vmatpush1.bf16.xpose.msra.mxu0 0
    %684 = vmatprep.subr.bf16.mxu0 0
    %685 = vmatpush1.bf16.xpose.msra.mxu0 %v668
    %686 = vmatprep.subr.bf16.mxu0 0
    %687 = vmatpush2.bf16.xpose.msra.mxu0 0
    %688 = vmatprep.subr.bf16.mxu0 0
    %689 = vmatpush2.bf16.xpose.msra.mxu0 0
    %690 = vmatprep.subr.bf16.mxu0 0
    %691 = vmatpush2.bf16.xpose.msra.mxu0 0
    %692 = vmatprep.subr.bf16.mxu0 0
    %693 = vmatpush2.bf16.xpose.msra.mxu0 0
    %694 = vmatprep.subr.bf16.mxu0 0
    %695 = vmatpush2.bf16.xpose.msra.mxu0 0
    %696 = vmatprep.subr.bf16.mxu0 0
    %697 = vmatpush2.bf16.xpose.msra.mxu0 0
    %698 = vmatprep.subr.bf16.mxu0 0
    %699 = vmatpush2.bf16.xpose.msra.mxu0 0
    %700 = vmatprep.subr.bf16.mxu0 0
    %701 = vmatpush2.bf16.xpose.msra.mxu0 0
    %702 = vmatprep.mubr.bf16.mxu0 0
    %703 = vmatmul.mubr.bf16.gmra.mxu0 %v665
    %v704 = vpop.f32.mrf.mxu0
    %v705 = vadd.f32 0.0, %v704
    %v706 = vpop.f32.mrf.mxu0
    %v707 = vpop.f32.mrf.mxu0
    %v708 = vpop.f32.mrf.mxu0
    %709 = vdwg.mxu0
    %v710 = vsel %vm396, %v653, -inf
    %711 = vmax.xlane.f32.xlu0 %v710
    %v712 = vpop.xlane.xlu0 %711
    %v713 = vsel %vm396, %v705, -inf
    %714 = vmax.xlane.f32.xlu0 %v713
    %v715 = vpop.xlane.xlu0 %714
    %v716 = vsub.f32 %v653, %v712
    %v717 = vsub.f32 %v705, %v715
    %v718 = vmul.f32 %v716, 1.442695
    %v719 = vpow.pop %v718
    %v720 = vmul.f32 %v717, 1.442695
    %v721 = vpow.pop %v720
    %v722 = vsel %vm396, %v719, 0.0
    %723 = vadd.xlane.f32.xlu0 %v722
    %v724 = vpop.xlane.xlu0 %723
    %v725 = vsel %vm396, %v721, 0.0
    %726 = vadd.xlane.f32.xlu0 %v725
    %v727 = vpop.xlane.xlu0 %726
    %v728 = vpack.c.bf16 %v719, %v719
    %v729 = vpack.c.bf16 %v721, %v721
    %731 = vrot.lane.b32.xlu0 %v394, 120
    %v732 = vpop.permute.xlu0 %731
    %v734 = vsel %vm396, %v728, 0
    %v737 = vsel %vm512, %v732, 0
    %739 = vmatprep.subr.bf16.mxu0 0
    %740 = vmatpush1.bf16.msra.mxu0 0
    %741 = vmatprep.subr.bf16.mxu0 0
    %742 = vmatpush1.bf16.msra.mxu0 0
    %743 = vmatprep.subr.bf16.mxu0 0
    %744 = vmatpush1.bf16.msra.mxu0 0
    %745 = vmatprep.subr.bf16.mxu0 0
    %746 = vmatpush1.bf16.msra.mxu0 0
    %747 = vmatprep.subr.bf16.mxu0 0
    %748 = vmatpush1.bf16.msra.mxu0 0
    %749 = vmatprep.subr.bf16.mxu0 0
    %750 = vmatpush1.bf16.msra.mxu0 0
    %751 = vmatprep.subr.bf16.mxu0 0
    %752 = vmatpush1.bf16.msra.mxu0 0
    %753 = vmatprep.subr.bf16.mxu0 0
    %754 = vmatpush1.bf16.msra.mxu0 %v737
    %755 = vmatprep.subr.bf16.mxu0 0
    %756 = vmatpush2.bf16.msra.mxu0 0
    %757 = vmatprep.subr.bf16.mxu0 0
    %758 = vmatpush2.bf16.msra.mxu0 0
    %759 = vmatprep.subr.bf16.mxu0 0
    %760 = vmatpush2.bf16.msra.mxu0 0
    %761 = vmatprep.subr.bf16.mxu0 0
    %762 = vmatpush2.bf16.msra.mxu0 0
    %763 = vmatprep.subr.bf16.mxu0 0
    %764 = vmatpush2.bf16.msra.mxu0 0
    %765 = vmatprep.subr.bf16.mxu0 0
    %766 = vmatpush2.bf16.msra.mxu0 0
    %767 = vmatprep.subr.bf16.mxu0 0
    %768 = vmatpush2.bf16.msra.mxu0 0
    %769 = vmatprep.subr.bf16.mxu0 0
    %770 = vmatpush2.bf16.msra.mxu0 0
    %771 = vmatprep.mubr.bf16.mxu0 0
    %772 = vmatmul.mubr.bf16.gmra.mxu0 %v734
    %v773 = vpop.f32.mrf.mxu0
    %v774 = vadd.f32 0.0, %v773
    %v775 = vpop.f32.mrf.mxu0
    %v776 = vpop.f32.mrf.mxu0
    %v777 = vpop.f32.mrf.mxu0
    %778 = vdwg.mxu0
    %780 = vrot.lane.b32.xlu0 %v395, 120
    %v781 = vpop.permute.xlu0 %780
    %v783 = vsel %vm396, %v729, 0
    %v786 = vsel %vm512, %v781, 0
    %788 = vmatprep.subr.bf16.mxu0 0
    %789 = vmatpush1.bf16.msra.mxu0 0
    %790 = vmatprep.subr.bf16.mxu0 0
    %791 = vmatpush1.bf16.msra.mxu0 0
    %792 = vmatprep.subr.bf16.mxu0 0
    %793 = vmatpush1.bf16.msra.mxu0 0
    %794 = vmatprep.subr.bf16.mxu0 0
    %795 = vmatpush1.bf16.msra.mxu0 0
    %796 = vmatprep.subr.bf16.mxu0 0
    %797 = vmatpush1.bf16.msra.mxu0 0
    %798 = vmatprep.subr.bf16.mxu0 0
    %799 = vmatpush1.bf16.msra.mxu0 0
    %800 = vmatprep.subr.bf16.mxu0 0
    %801 = vmatpush1.bf16.msra.mxu0 0
    %802 = vmatprep.subr.bf16.mxu0 0
    %803 = vmatpush1.bf16.msra.mxu0 %v786
    %804 = vmatprep.subr.bf16.mxu0 0
    %805 = vmatpush2.bf16.msra.mxu0 0
    %806 = vmatprep.subr.bf16.mxu0 0
    %807 = vmatpush2.bf16.msra.mxu0 0
    %808 = vmatprep.subr.bf16.mxu0 0
    %809 = vmatpush2.bf16.msra.mxu0 0
    %810 = vmatprep.subr.bf16.mxu0 0
    %811 = vmatpush2.bf16.msra.mxu0 0
    %812 = vmatprep.subr.bf16.mxu0 0
    %813 = vmatpush2.bf16.msra.mxu0 0
    %814 = vmatprep.subr.bf16.mxu0 0
    %815 = vmatpush2.bf16.msra.mxu0 0
    %816 = vmatprep.subr.bf16.mxu0 0
    %817 = vmatpush2.bf16.msra.mxu0 0
    %818 = vmatprep.subr.bf16.mxu0 0
    %819 = vmatpush2.bf16.msra.mxu0 0
    %820 = vmatprep.mubr.bf16.mxu0 0
    %821 = vmatmul.mubr.bf16.gmra.mxu0 %v783
    %v822 = vpop.f32.mrf.mxu0
    %v823 = vadd.f32 0.0, %v822
    %v824 = vpop.f32.mrf.mxu0
    %v825 = vpop.f32.mrf.mxu0
    %v826 = vpop.f32.mrf.mxu0
    %827 = vdwg.mxu0
    %v828 = vrcp.pop %v724
    %v829 = vmul.f32 %v774, %v828
    %v830 = vrcp.pop %v727
    %v831 = vmul.f32 %v823, %v830
    %832 = vrot.lane.b32.xlu0 %v390, 112
    %v833 = vpop.permute.xlu0 %832
    %834 = vrot.lane.b32.xlu0 %v392, 112
    %v835 = vpop.permute.xlu0 %834
    %v837 = vsel %vm396, %v833, 0
    %v840 = vsel %vm396, %v835, 0
    %842 = vmatprep.subr.bf16.mxu0 0
    %843 = vmatpush1.bf16.xpose.msra.mxu0 0
    %844 = vmatprep.subr.bf16.mxu0 0
    %845 = vmatpush1.bf16.xpose.msra.mxu0 0
    %846 = vmatprep.subr.bf16.mxu0 0
    %847 = vmatpush1.bf16.xpose.msra.mxu0 0
    %848 = vmatprep.subr.bf16.mxu0 0
    %849 = vmatpush1.bf16.xpose.msra.mxu0 0
    %850 = vmatprep.subr.bf16.mxu0 0
    %851 = vmatpush1.bf16.xpose.msra.mxu0 0
    %852 = vmatprep.subr.bf16.mxu0 0
    %853 = vmatpush1.bf16.xpose.msra.mxu0 0
    %854 = vmatprep.subr.bf16.mxu0 0
    %855 = vmatpush1.bf16.xpose.msra.mxu0 0
    %856 = vmatprep.subr.bf16.mxu0 0
    %857 = vmatpush1.bf16.xpose.msra.mxu0 %v840
    %858 = vmatprep.subr.bf16.mxu0 0
    %859 = vmatpush2.bf16.xpose.msra.mxu0 0
    %860 = vmatprep.subr.bf16.mxu0 0
    %861 = vmatpush2.bf16.xpose.msra.mxu0 0
    %862 = vmatprep.subr.bf16.mxu0 0
    %863 = vmatpush2.bf16.xpose.msra.mxu0 0
    %864 = vmatprep.subr.bf16.mxu0 0
    %865 = vmatpush2.bf16.xpose.msra.mxu0 0
    %866 = vmatprep.subr.bf16.mxu0 0
    %867 = vmatpush2.bf16.xpose.msra.mxu0 0
    %868 = vmatprep.subr.bf16.mxu0 0
    %869 = vmatpush2.bf16.xpose.msra.mxu0 0
    %870 = vmatprep.subr.bf16.mxu0 0
    %871 = vmatpush2.bf16.xpose.msra.mxu0 0
    %872 = vmatprep.subr.bf16.mxu0 0
    %873 = vmatpush2.bf16.xpose.msra.mxu0 0
    %874 = vmatprep.mubr.bf16.mxu0 0
    %875 = vmatmul.mubr.bf16.gmra.mxu0 %v837
    %v876 = vpop.f32.mrf.mxu0
    %v877 = vadd.f32 0.0, %v876
    %v878 = vpop.f32.mrf.mxu0
    %v879 = vpop.f32.mrf.mxu0
    %v880 = vpop.f32.mrf.mxu0
    %881 = vdwg.mxu0
    %882 = vrot.lane.b32.xlu0 %v391, 112
    %v883 = vpop.permute.xlu0 %882
    %884 = vrot.lane.b32.xlu0 %v393, 112
    %v885 = vpop.permute.xlu0 %884
    %v887 = vsel %vm396, %v883, 0
    %v890 = vsel %vm396, %v885, 0
    %892 = vmatprep.subr.bf16.mxu0 0
    %893 = vmatpush1.bf16.xpose.msra.mxu0 0
    %894 = vmatprep.subr.bf16.mxu0 0
    %895 = vmatpush1.bf16.xpose.msra.mxu0 0
    %896 = vmatprep.subr.bf16.mxu0 0
    %897 = vmatpush1.bf16.xpose.msra.mxu0 0
    %898 = vmatprep.subr.bf16.mxu0 0
    %899 = vmatpush1.bf16.xpose.msra.mxu0 0
    %900 = vmatprep.subr.bf16.mxu0 0
    %901 = vmatpush1.bf16.xpose.msra.mxu0 0
    %902 = vmatprep.subr.bf16.mxu0 0
    %903 = vmatpush1.bf16.xpose.msra.mxu0 0
    %904 = vmatprep.subr.bf16.mxu0 0
    %905 = vmatpush1.bf16.xpose.msra.mxu0 0
    %906 = vmatprep.subr.bf16.mxu0 0
    %907 = vmatpush1.bf16.xpose.msra.mxu0 %v890
    %908 = vmatprep.subr.bf16.mxu0 0
    %909 = vmatpush2.bf16.xpose.msra.mxu0 0
    %910 = vmatprep.subr.bf16.mxu0 0
    %911 = vmatpush2.bf16.xpose.msra.mxu0 0
    %912 = vmatprep.subr.bf16.mxu0 0
    %913 = vmatpush2.bf16.xpose.msra.mxu0 0
    %914 = vmatprep.subr.bf16.mxu0 0
    %915 = vmatpush2.bf16.xpose.msra.mxu0 0
    %916 = vmatprep.subr.bf16.mxu0 0
    %917 = vmatpush2.bf16.xpose.msra.mxu0 0
    %918 = vmatprep.subr.bf16.mxu0 0
    %919 = vmatpush2.bf16.xpose.msra.mxu0 0
    %920 = vmatprep.subr.bf16.mxu0 0
    %921 = vmatpush2.bf16.xpose.msra.mxu0 0
    %922 = vmatprep.subr.bf16.mxu0 0
    %923 = vmatpush2.bf16.xpose.msra.mxu0 0
    %924 = vmatprep.mubr.bf16.mxu0 0
    %925 = vmatmul.mubr.bf16.gmra.mxu0 %v887
    %v926 = vpop.f32.mrf.mxu0
    %v927 = vadd.f32 0.0, %v926
    %v928 = vpop.f32.mrf.mxu0
    %v929 = vpop.f32.mrf.mxu0
    %v930 = vpop.f32.mrf.mxu0
    %931 = vdwg.mxu0
    %v932 = vsel %vm396, %v877, -inf
    %933 = vmax.xlane.f32.xlu0 %v932
    %v934 = vpop.xlane.xlu0 %933
    %v935 = vsel %vm396, %v927, -inf
    %936 = vmax.xlane.f32.xlu0 %v935
    %v937 = vpop.xlane.xlu0 %936
    %v938 = vsub.f32 %v877, %v934
    %v939 = vsub.f32 %v927, %v937
    %v940 = vmul.f32 %v938, 1.442695
    %v941 = vpow.pop %v940
    %v942 = vmul.f32 %v939, 1.442695
    %v943 = vpow.pop %v942
    %v944 = vsel %vm396, %v941, 0.0
    %945 = vadd.xlane.f32.xlu0 %v944
    %v946 = vpop.xlane.xlu0 %945
    %v947 = vsel %vm396, %v943, 0.0
    %948 = vadd.xlane.f32.xlu0 %v947
    %v949 = vpop.xlane.xlu0 %948
    %v950 = vpack.c.bf16 %v941, %v941
    %v951 = vpack.c.bf16 %v943, %v943
    %952 = vrot.lane.b32.xlu0 %v394, 112
    %v953 = vpop.permute.xlu0 %952
    %v955 = vsel %vm396, %v950, 0
    %v958 = vsel %vm512, %v953, 0
    %960 = vmatprep.subr.bf16.mxu0 0
    %961 = vmatpush1.bf16.msra.mxu0 0
    %962 = vmatprep.subr.bf16.mxu0 0
    %963 = vmatpush1.bf16.msra.mxu0 0
    %964 = vmatprep.subr.bf16.mxu0 0
    %965 = vmatpush1.bf16.msra.mxu0 0
    %966 = vmatprep.subr.bf16.mxu0 0
    %967 = vmatpush1.bf16.msra.mxu0 0
    %968 = vmatprep.subr.bf16.mxu0 0
    %969 = vmatpush1.bf16.msra.mxu0 0
    %970 = vmatprep.subr.bf16.mxu0 0
    %971 = vmatpush1.bf16.msra.mxu0 0
    %972 = vmatprep.subr.bf16.mxu0 0
    %973 = vmatpush1.bf16.msra.mxu0 0
    %974 = vmatprep.subr.bf16.mxu0 0
    %975 = vmatpush1.bf16.msra.mxu0 %v958
    %976 = vmatprep.subr.bf16.mxu0 0
    %977 = vmatpush2.bf16.msra.mxu0 0
    %978 = vmatprep.subr.bf16.mxu0 0
    %979 = vmatpush2.bf16.msra.mxu0 0
    %980 = vmatprep.subr.bf16.mxu0 0
    %981 = vmatpush2.bf16.msra.mxu0 0
    %982 = vmatprep.subr.bf16.mxu0 0
    %983 = vmatpush2.bf16.msra.mxu0 0
    %984 = vmatprep.subr.bf16.mxu0 0
    %985 = vmatpush2.bf16.msra.mxu0 0
    %986 = vmatprep.subr.bf16.mxu0 0
    %987 = vmatpush2.bf16.msra.mxu0 0
    %988 = vmatprep.subr.bf16.mxu0 0
    %989 = vmatpush2.bf16.msra.mxu0 0
    %990 = vmatprep.subr.bf16.mxu0 0
    %991 = vmatpush2.bf16.msra.mxu0 0
    %992 = vmatprep.mubr.bf16.mxu0 0
    %993 = vmatmul.mubr.bf16.gmra.mxu0 %v955
    %v994 = vpop.f32.mrf.mxu0
    %v995 = vadd.f32 0.0, %v994
    %v996 = vpop.f32.mrf.mxu0
    %v997 = vpop.f32.mrf.mxu0
    %v998 = vpop.f32.mrf.mxu0
    %999 = vdwg.mxu0
    %1000 = vrot.lane.b32.xlu0 %v395, 112
    %v1001 = vpop.permute.xlu0 %1000
    %v1003 = vsel %vm396, %v951, 0
    %v1006 = vsel %vm512, %v1001, 0
    %1008 = vmatprep.subr.bf16.mxu0 0
    %1009 = vmatpush1.bf16.msra.mxu0 0
    %1010 = vmatprep.subr.bf16.mxu0 0
    %1011 = vmatpush1.bf16.msra.mxu0 0
    %1012 = vmatprep.subr.bf16.mxu0 0
    %1013 = vmatpush1.bf16.msra.mxu0 0
    %1014 = vmatprep.subr.bf16.mxu0 0
    %1015 = vmatpush1.bf16.msra.mxu0 0
    %1016 = vmatprep.subr.bf16.mxu0 0
    %1017 = vmatpush1.bf16.msra.mxu0 0
    %1018 = vmatprep.subr.bf16.mxu0 0
    %1019 = vmatpush1.bf16.msra.mxu0 0
    %1020 = vmatprep.subr.bf16.mxu0 0
    %1021 = vmatpush1.bf16.msra.mxu0 0
    %1022 = vmatprep.subr.bf16.mxu0 0
    %1023 = vmatpush1.bf16.msra.mxu0 %v1006
    %1024 = vmatprep.subr.bf16.mxu0 0
    %1025 = vmatpush2.bf16.msra.mxu0 0
    %1026 = vmatprep.subr.bf16.mxu0 0
    %1027 = vmatpush2.bf16.msra.mxu0 0
    %1028 = vmatprep.subr.bf16.mxu0 0
    %1029 = vmatpush2.bf16.msra.mxu0 0
    %1030 = vmatprep.subr.bf16.mxu0 0
    %1031 = vmatpush2.bf16.msra.mxu0 0
    %1032 = vmatprep.subr.bf16.mxu0 0
    %1033 = vmatpush2.bf16.msra.mxu0 0
    %1034 = vmatprep.subr.bf16.mxu0 0
    %1035 = vmatpush2.bf16.msra.mxu0 0
    %1036 = vmatprep.subr.bf16.mxu0 0
    %1037 = vmatpush2.bf16.msra.mxu0 0
    %1038 = vmatprep.subr.bf16.mxu0 0
    %1039 = vmatpush2.bf16.msra.mxu0 0
    %1040 = vmatprep.mubr.bf16.mxu0 0
    %1041 = vmatmul.mubr.bf16.gmra.mxu0 %v1003
    %v1042 = vpop.f32.mrf.mxu0
    %v1043 = vadd.f32 0.0, %v1042
    %v1044 = vpop.f32.mrf.mxu0
    %v1045 = vpop.f32.mrf.mxu0
    %v1046 = vpop.f32.mrf.mxu0
    %1047 = vdwg.mxu0
    %v1048 = vrcp.pop %v946
    %v1049 = vmul.f32 %v995, %v1048
    %v1050 = vrcp.pop %v949
    %v1051 = vmul.f32 %v1043, %v1050
    %1052 = vrot.lane.b32.xlu0 %v390, 104
    %v1053 = vpop.permute.xlu0 %1052
    %1054 = vrot.lane.b32.xlu0 %v392, 104
    %v1055 = vpop.permute.xlu0 %1054
    %v1057 = vsel %vm396, %v1053, 0
    %v1060 = vsel %vm396, %v1055, 0
    %1062 = vmatprep.subr.bf16.mxu0 0
    %1063 = vmatpush1.bf16.xpose.msra.mxu0 0
    %1064 = vmatprep.subr.bf16.mxu0 0
    %1065 = vmatpush1.bf16.xpose.msra.mxu0 0
    %1066 = vmatprep.subr.bf16.mxu0 0
    %1067 = vmatpush1.bf16.xpose.msra.mxu0 0
    %1068 = vmatprep.subr.bf16.mxu0 0
    %1069 = vmatpush1.bf16.xpose.msra.mxu0 0
    %1070 = vmatprep.subr.bf16.mxu0 0
    %1071 = vmatpush1.bf16.xpose.msra.mxu0 0
    %1072 = vmatprep.subr.bf16.mxu0 0
    %1073 = vmatpush1.bf16.xpose.msra.mxu0 0
    %1074 = vmatprep.subr.bf16.mxu0 0
    %1075 = vmatpush1.bf16.xpose.msra.mxu0 0
    %1076 = vmatprep.subr.bf16.mxu0 0
    %1077 = vmatpush1.bf16.xpose.msra.mxu0 %v1060
    %1078 = vmatprep.subr.bf16.mxu0 0
    %1079 = vmatpush2.bf16.xpose.msra.mxu0 0
    %1080 = vmatprep.subr.bf16.mxu0 0
    %1081 = vmatpush2.bf16.xpose.msra.mxu0 0
    %1082 = vmatprep.subr.bf16.mxu0 0
    %1083 = vmatpush2.bf16.xpose.msra.mxu0 0
    %1084 = vmatprep.subr.bf16.mxu0 0
    %1085 = vmatpush2.bf16.xpose.msra.mxu0 0
    %1086 = vmatprep.subr.bf16.mxu0 0
    %1087 = vmatpush2.bf16.xpose.msra.mxu0 0
    %1088 = vmatprep.subr.bf16.mxu0 0
    %1089 = vmatpush2.bf16.xpose.msra.mxu0 0
    %1090 = vmatprep.subr.bf16.mxu0 0
    %1091 = vmatpush2.bf16.xpose.msra.mxu0 0
    %1092 = vmatprep.subr.bf16.mxu0 0
    %1093 = vmatpush2.bf16.xpose.msra.mxu0 0
    %1094 = vmatprep.mubr.bf16.mxu0 0
    %1095 = vmatmul.mubr.bf16.gmra.mxu0 %v1057
    %v1096 = vpop.f32.mrf.mxu0
    %v1097 = vadd.f32 0.0, %v1096
    %v1098 = vpop.f32.mrf.mxu0
    %v1099 = vpop.f32.mrf.mxu0
    %v1100 = vpop.f32.mrf.mxu0
    %1101 = vdwg.mxu0
    %1102 = vrot.lane.b32.xlu0 %v391, 104
    %v1103 = vpop.permute.xlu0 %1102
    %1104 = vrot.lane.b32.xlu0 %v393, 104
    %v1105 = vpop.permute.xlu0 %1104
    %v1107 = vsel %vm396, %v1103, 0
    %v1110 = vsel %vm396, %v1105, 0
    %1112 = vmatprep.subr.bf16.mxu0 0
    %1113 = vmatpush1.bf16.xpose.msra.mxu0 0
    %1114 = vmatprep.subr.bf16.mxu0 0
    %1115 = vmatpush1.bf16.xpose.msra.mxu0 0
    %1116 = vmatprep.subr.bf16.mxu0 0
    %1117 = vmatpush1.bf16.xpose.msra.mxu0 0
    %1118 = vmatprep.subr.bf16.mxu0 0
    %1119 = vmatpush1.bf16.xpose.msra.mxu0 0
    %1120 = vmatprep.subr.bf16.mxu0 0
    %1121 = vmatpush1.bf16.xpose.msra.mxu0 0
    %1122 = vmatprep.subr.bf16.mxu0 0
    %1123 = vmatpush1.bf16.xpose.msra.mxu0 0
    %1124 = vmatprep.subr.bf16.mxu0 0
    %1125 = vmatpush1.bf16.xpose.msra.mxu0 0
    %1126 = vmatprep.subr.bf16.mxu0 0
    %1127 = vmatpush1.bf16.xpose.msra.mxu0 %v1110
    %1128 = vmatprep.subr.bf16.mxu0 0
    %1129 = vmatpush2.bf16.xpose.msra.mxu0 0
    %1130 = vmatprep.subr.bf16.mxu0 0
    %1131 = vmatpush2.bf16.xpose.msra.mxu0 0
    %1132 = vmatprep.subr.bf16.mxu0 0
    %1133 = vmatpush2.bf16.xpose.msra.mxu0 0
    %1134 = vmatprep.subr.bf16.mxu0 0
    %1135 = vmatpush2.bf16.xpose.msra.mxu0 0
    %1136 = vmatprep.subr.bf16.mxu0 0
    %1137 = vmatpush2.bf16.xpose.msra.mxu0 0
    %1138 = vmatprep.subr.bf16.mxu0 0
    %1139 = vmatpush2.bf16.xpose.msra.mxu0 0
    %1140 = vmatprep.subr.bf16.mxu0 0
    %1141 = vmatpush2.bf16.xpose.msra.mxu0 0
    %1142 = vmatprep.subr.bf16.mxu0 0
    %1143 = vmatpush2.bf16.xpose.msra.mxu0 0
    %1144 = vmatprep.mubr.bf16.mxu0 0
    %1145 = vmatmul.mubr.bf16.gmra.mxu0 %v1107
    %v1146 = vpop.f32.mrf.mxu0
    %v1147 = vadd.f32 0.0, %v1146
    %v1148 = vpop.f32.mrf.mxu0
    %v1149 = vpop.f32.mrf.mxu0
    %v1150 = vpop.f32.mrf.mxu0
    %1151 = vdwg.mxu0
    %v1152 = vsel %vm396, %v1097, -inf
    %1153 = vmax.xlane.f32.xlu0 %v1152
    %v1154 = vpop.xlane.xlu0 %1153
    %v1155 = vsel %vm396, %v1147, -inf
    %1156 = vmax.xlane.f32.xlu0 %v1155
    %v1157 = vpop.xlane.xlu0 %1156
    %v1158 = vsub.f32 %v1097, %v1154
    %v1159 = vsub.f32 %v1147, %v1157
    %v1160 = vmul.f32 %v1158, 1.442695
    %v1161 = vpow.pop %v1160
    %v1162 = vmul.f32 %v1159, 1.442695
    %v1163 = vpow.pop %v1162
    %v1164 = vsel %vm396, %v1161, 0.0
    %1165 = vadd.xlane.f32.xlu0 %v1164
    %v1166 = vpop.xlane.xlu0 %1165
    %v1167 = vsel %vm396, %v1163, 0.0
    %1168 = vadd.xlane.f32.xlu0 %v1167
    %v1169 = vpop.xlane.xlu0 %1168
    %v1170 = vpack.c.bf16 %v1161, %v1161
    %v1171 = vpack.c.bf16 %v1163, %v1163
    %1172 = vrot.lane.b32.xlu0 %v394, 104
    %v1173 = vpop.permute.xlu0 %1172
    %v1175 = vsel %vm396, %v1170, 0
    %v1178 = vsel %vm512, %v1173, 0
    %1180 = vmatprep.subr.bf16.mxu0 0
    %1181 = vmatpush1.bf16.msra.mxu0 0
    %1182 = vmatprep.subr.bf16.mxu0 0
    %1183 = vmatpush1.bf16.msra.mxu0 0
    %1184 = vmatprep.subr.bf16.mxu0 0
    %1185 = vmatpush1.bf16.msra.mxu0 0
    %1186 = vmatprep.subr.bf16.mxu0 0
    %1187 = vmatpush1.bf16.msra.mxu0 0
    %1188 = vmatprep.subr.bf16.mxu0 0
    %1189 = vmatpush1.bf16.msra.mxu0 0
    %1190 = vmatprep.subr.bf16.mxu0 0
    %1191 = vmatpush1.bf16.msra.mxu0 0
    %1192 = vmatprep.subr.bf16.mxu0 0
    %1193 = vmatpush1.bf16.msra.mxu0 0
    %1194 = vmatprep.subr.bf16.mxu0 0
    %1195 = vmatpush1.bf16.msra.mxu0 %v1178
    %1196 = vmatprep.subr.bf16.mxu0 0
    %1197 = vmatpush2.bf16.msra.mxu0 0
    %1198 = vmatprep.subr.bf16.mxu0 0
    %1199 = vmatpush2.bf16.msra.mxu0 0
    %1200 = vmatprep.subr.bf16.mxu0 0
    %1201 = vmatpush2.bf16.msra.mxu0 0
    %1202 = vmatprep.subr.bf16.mxu0 0
    %1203 = vmatpush2.bf16.msra.mxu0 0
    %1204 = vmatprep.subr.bf16.mxu0 0
    %1205 = vmatpush2.bf16.msra.mxu0 0
    %1206 = vmatprep.subr.bf16.mxu0 0
    %1207 = vmatpush2.bf16.msra.mxu0 0
    %1208 = vmatprep.subr.bf16.mxu0 0
    %1209 = vmatpush2.bf16.msra.mxu0 0
    %1210 = vmatprep.subr.bf16.mxu0 0
    %1211 = vmatpush2.bf16.msra.mxu0 0
    %1212 = vmatprep.mubr.bf16.mxu0 0
    %1213 = vmatmul.mubr.bf16.gmra.mxu0 %v1175
    %v1214 = vpop.f32.mrf.mxu0
    %v1215 = vadd.f32 0.0, %v1214
    %v1216 = vpop.f32.mrf.mxu0
    %v1217 = vpop.f32.mrf.mxu0
    %v1218 = vpop.f32.mrf.mxu0
    %1219 = vdwg.mxu0
    %1220 = vrot.lane.b32.xlu0 %v395, 104
    %v1221 = vpop.permute.xlu0 %1220
    %v1223 = vsel %vm396, %v1171, 0
    %v1226 = vsel %vm512, %v1221, 0
    %1228 = vmatprep.subr.bf16.mxu0 0
    %1229 = vmatpush1.bf16.msra.mxu0 0
    %1230 = vmatprep.subr.bf16.mxu0 0
    %1231 = vmatpush1.bf16.msra.mxu0 0
    %1232 = vmatprep.subr.bf16.mxu0 0
    %1233 = vmatpush1.bf16.msra.mxu0 0
    %1234 = vmatprep.subr.bf16.mxu0 0
    %1235 = vmatpush1.bf16.msra.mxu0 0
    %1236 = vmatprep.subr.bf16.mxu0 0
    %1237 = vmatpush1.bf16.msra.mxu0 0
    %1238 = vmatprep.subr.bf16.mxu0 0
    %1239 = vmatpush1.bf16.msra.mxu0 0
    %1240 = vmatprep.subr.bf16.mxu0 0
    %1241 = vmatpush1.bf16.msra.mxu0 0
    %1242 = vmatprep.subr.bf16.mxu0 0
    %1243 = vmatpush1.bf16.msra.mxu0 %v1226
    %1244 = vmatprep.subr.bf16.mxu0 0
    %1245 = vmatpush2.bf16.msra.mxu0 0
    %1246 = vmatprep.subr.bf16.mxu0 0
    %1247 = vmatpush2.bf16.msra.mxu0 0
    %1248 = vmatprep.subr.bf16.mxu0 0
    %1249 = vmatpush2.bf16.msra.mxu0 0
    %1250 = vmatprep.subr.bf16.mxu0 0
    %1251 = vmatpush2.bf16.msra.mxu0 0
    %1252 = vmatprep.subr.bf16.mxu0 0
    %1253 = vmatpush2.bf16.msra.mxu0 0
    %1254 = vmatprep.subr.bf16.mxu0 0
    %1255 = vmatpush2.bf16.msra.mxu0 0
    %1256 = vmatprep.subr.bf16.mxu0 0
    %1257 = vmatpush2.bf16.msra.mxu0 0
    %1258 = vmatprep.subr.bf16.mxu0 0
    %1259 = vmatpush2.bf16.msra.mxu0 0
    %1260 = vmatprep.mubr.bf16.mxu0 0
    %1261 = vmatmul.mubr.bf16.gmra.mxu0 %v1223
    %v1262 = vpop.f32.mrf.mxu0
    %v1263 = vadd.f32 0.0, %v1262
    %v1264 = vpop.f32.mrf.mxu0
    %v1265 = vpop.f32.mrf.mxu0
    %v1266 = vpop.f32.mrf.mxu0
    %1267 = vdwg.mxu0
    %v1268 = vrcp.pop %v1166
    %v1269 = vmul.f32 %v1215, %v1268
    %v1270 = vrcp.pop %v1169
    %v1271 = vmul.f32 %v1263, %v1270
    %1274 = vrot.lane.b32.xlu0 %v829, 8
    %v1275 = vpop.permute.xlu0 %1274
    %1276 = vrot.lane.b32.xlu0 %v831, 8
    %v1277 = vpop.permute.xlu0 %1276
    %1282 = vrot.lane.b32.xlu0 %v1049, 16
    %v1283 = vpop.permute.xlu0 %1282
    %1284 = vrot.lane.b32.xlu0 %v1051, 16
    %v1285 = vpop.permute.xlu0 %1284
    %1290 = vrot.lane.b32.xlu0 %v1269, 24
    %v1291 = vpop.permute.xlu0 %1290
    %1292 = vrot.lane.b32.xlu0 %v1271, 24
    %v1293 = vpop.permute.xlu0 %1292
    %v1296 = vsel %vm396, %v603, %v1275
    %v1297 = vsel %vm396, %v605, %v1277
    %vm1298 = vcmask 130048
    %v1299 = vsel %vm1298, %v1296, %v1283
    %v1300 = vsel %vm1298, %v1297, %v1285
    %vm1301 = vcmask 195584
    %v1302 = vsel %vm1301, %v1299, %v1291
    %v1303 = vsel %vm1301, %v1300, %v1293
    %v1304 = vpack.c.bf16 %v1303, %v1302
    %v1305 = vld [vmem:[%s9] sm:$0xf]
    %v1306 = vld [vmem:[%s9 + $0x4] sm:$0xf]
    %v1307 = vld [vmem:[%s9 + $0x8] sm:$0xf]
    %v1308 = vld [vmem:[%s9 + $0xc] sm:$0xf]
    %v1309 = vld [vmem:[#allocation17] sm:$0xf]
    %v1310 = vld [vmem:[#allocation17 + $0x4] sm:$0xf]
    %v1311 = vld [vmem:[#allocation17 + $0x8] sm:$0xf]
    %v1312 = vld [vmem:[#allocation17 + $0xc] sm:$0xf]
    %v1317 = vunpack.c.l.b16 %v1309
    %v1318 = vunpack.c.l.b16 %v1310
    %v1319 = vunpack.c.l.b16 %v1311
    %v1320 = vunpack.c.l.b16 %v1312
    %v1321 = vpack.c.b16 %v1318, %v1317
    %v1322 = vpack.c.b16 %v1320, %v1319
    %v1326 = vsel %vm211, %v1304, 0
    %1328 = vmatprep.subr.bf16.mxu0 0
    %1329 = vmatpush1.bf16.msra.mxu0 0
    %1330 = vmatprep.subr.bf16.mxu0 0
    %1331 = vmatpush1.bf16.msra.mxu0 0
    %1332 = vmatprep.subr.bf16.mxu0 0
    %1333 = vmatpush1.bf16.msra.mxu0 0
    %1334 = vmatprep.subr.bf16.mxu0 0
    %1335 = vmatpush1.bf16.msra.mxu0 0
    %1336 = vmatprep.subr.bf16.mxu0 0
    %1337 = vmatpush1.bf16.msra.mxu0 0
    %1338 = vmatprep.subr.bf16.mxu0 0
    %1339 = vmatpush1.bf16.msra.mxu0 0
    %1340 = vmatprep.subr.bf16.mxu0 0
    %1341 = vmatpush1.bf16.msra.mxu0 %v1322
    %1342 = vmatprep.subr.bf16.mxu0 0
    %1343 = vmatpush1.bf16.msra.mxu0 %v1321
    %1344 = vmatprep.subr.bf16.mxu0 0
    %1345 = vmatpush2.bf16.msra.mxu0 0
    %1346 = vmatprep.subr.bf16.mxu0 0
    %1347 = vmatpush2.bf16.msra.mxu0 0
    %1348 = vmatprep.subr.bf16.mxu0 0
    %1349 = vmatpush2.bf16.msra.mxu0 0
    %1350 = vmatprep.subr.bf16.mxu0 0
    %1351 = vmatpush2.bf16.msra.mxu0 0
    %1352 = vmatprep.subr.bf16.mxu0 0
    %1353 = vmatpush2.bf16.msra.mxu0 0
    %1354 = vmatprep.subr.bf16.mxu0 0
    %1355 = vmatpush2.bf16.msra.mxu0 0
    %1356 = vmatprep.subr.bf16.mxu0 0
    %1357 = vmatpush2.bf16.msra.mxu0 0
    %1358 = vmatprep.subr.bf16.mxu0 0
    %1359 = vmatpush2.bf16.msra.mxu0 0
    %1360 = vmatprep.mubr.bf16.mxu0 0
    %1361 = vmatmul.mubr.bf16.gmra.mxu0 %v1326
    %v1362 = vpop.f32.mrf.mxu0
    %v1363 = vadd.f32 0.0, %v1362
    %v1364 = vpop.f32.mrf.mxu0
    %v1365 = vpop.f32.mrf.mxu0
    %v1366 = vadd.f32 0.0, %v1365
    %v1367 = vpop.f32.mrf.mxu0
    %1368 = vdwg.mxu0
    %v1373 = vunpack.c.l.b16 %v1305
    %v1374 = vunpack.c.l.b16 %v1306
    %v1375 = vunpack.c.l.b16 %v1307
    %v1376 = vunpack.c.l.b16 %v1308
    %v1377 = vpack.c.b16 %v1374, %v1373
    %v1378 = vpack.c.b16 %v1376, %v1375
    %1381 = vmatprep.subr.bf16.mxu0 0
    %1382 = vmatpush1.bf16.msra.mxu0 0
    %1383 = vmatprep.subr.bf16.mxu0 0
    %1384 = vmatpush1.bf16.msra.mxu0 0
    %1385 = vmatprep.subr.bf16.mxu0 0
    %1386 = vmatpush1.bf16.msra.mxu0 0
    %1387 = vmatprep.subr.bf16.mxu0 0
    %1388 = vmatpush1.bf16.msra.mxu0 0
    %1389 = vmatprep.subr.bf16.mxu0 0
    %1390 = vmatpush1.bf16.msra.mxu0 0
    %1391 = vmatprep.subr.bf16.mxu0 0
    %1392 = vmatpush1.bf16.msra.mxu0 0
    %1393 = vmatprep.subr.bf16.mxu0 0
    %1394 = vmatpush1.bf16.msra.mxu0 %v1378
    %1395 = vmatprep.subr.bf16.mxu0 0
    %1396 = vmatpush1.bf16.msra.mxu0 %v1377
    %1397 = vmatprep.subr.bf16.mxu0 0
    %1398 = vmatpush2.bf16.msra.mxu0 0
    %1399 = vmatprep.subr.bf16.mxu0 0
    %1400 = vmatpush2.bf16.msra.mxu0 0
    %1401 = vmatprep.subr.bf16.mxu0 0
    %1402 = vmatpush2.bf16.msra.mxu0 0
    %1403 = vmatprep.subr.bf16.mxu0 0
    %1404 = vmatpush2.bf16.msra.mxu0 0
    %1405 = vmatprep.subr.bf16.mxu0 0
    %1406 = vmatpush2.bf16.msra.mxu0 0
    %1407 = vmatprep.subr.bf16.mxu0 0
    %1408 = vmatpush2.bf16.msra.mxu0 0
    %1409 = vmatprep.subr.bf16.mxu0 0
    %1410 = vmatpush2.bf16.msra.mxu0 0
    %1411 = vmatprep.subr.bf16.mxu0 0
    %1412 = vmatpush2.bf16.msra.mxu0 0
    %1413 = vmatprep.mubr.bf16.mxu0 0
    %1414 = vmatmul.mubr.bf16.gmra.mxu0 %v213
    %v1415 = vpop.f32.mrf.mxu0
    %v1416 = vadd.f32 %v1363, %v1415
    %v1417 = vpop.f32.mrf.mxu0
    %v1418 = vpop.f32.mrf.mxu0
    %v1419 = vadd.f32 %v1366, %v1418
    %v1420 = vpop.f32.mrf.mxu0
    %1421 = vdwg.mxu0
    %v1422 = vld [vmem:[%s11] sm:$0x1]
    %v1424 = vlaneseq
    %v1425 = vshrl.u32 %v1424, 7
    %v1426 = vsub.s32 0, %v1425
    %v1427 = vrot.slane %v1422, %v1426
    %v1429 = vadd.f32 %v1416, %v1427
    %v1430 = vadd.f32 %v1419, %v1427
    %v1431 = vadd.f32 %v1429, %v179
    %v1432 = vadd.f32 %v1430, %v180
    %v1433 = vsel %vm211, %v1431, 0.0
    %1434 = vadd.xlane.f32.xlu0 %v1433
    %v1435 = vpop.xlane.xlu0 %1434
    %v1436 = vsel %vm211, %v1432, 0.0
    %1437 = vadd.xlane.f32.xlu0 %v1436
    %v1438 = vpop.xlane.xlu0 %1437
    %v1439 = vrcp.pop 32.0
    %v1440 = vmul.f32 %v1435, %v1439
    %v1441 = vmul.f32 %v1438, %v1439
    %v1442 = vsub.f32 %v1431, %v1440
    %v1443 = vsub.f32 %v1432, %v1441
    %v1444 = vmul.f32 %v1442, %v1442
    %v1445 = vmul.f32 %v1443, %v1443
    %v1446 = vsel %vm211, %v1444, 0.0
    %1447 = vadd.xlane.f32.xlu0 %v1446
    %v1448 = vpop.xlane.xlu0 %1447
    %v1449 = vsel %vm211, %v1445, 0.0
    %1450 = vadd.xlane.f32.xlu0 %v1449
    %v1451 = vpop.xlane.xlu0 %1450
    %v1452 = vmul.f32 %v1448, %v1439
    %v1453 = vmul.f32 %v1451, %v1439
    %v1454 = vadd.f32 %v1452, 1e-05
    %v1455 = vadd.f32 %v1453, 1e-05
    %v1456 = vrsqrt.pop %v1454
    %v1457 = vrsqrt.pop %v1455
    %v1458 = vmul.f32 %v1442, %v1456
    %v1459 = vmul.f32 %v1443, %v1457
    %v1460 = vld [vmem:[%s12] sm:$0x1]
    %v1462 = vlaneseq
    %v1463 = vshrl.u32 %v1462, 7
    %v1464 = vsub.s32 0, %v1463
    %v1465 = vrot.slane %v1460, %v1464
    %v1467 = vmul.f32 %v1458, %v1465
    %v1468 = vmul.f32 %v1459, %v1465
    %v1469 = vld [vmem:[%s13] sm:$0x1]
    %v1471 = vlaneseq
    %v1472 = vshrl.u32 %v1471, 7
    %v1473 = vsub.s32 0, %v1472
    %v1474 = vrot.slane %v1469, %v1473
    %v1476 = vadd.f32 %v1467, %v1474
    %v1477 = vadd.f32 %v1468, %v1474
    %1478 = vst.msk [vmem:[#allocation19] sm:$0xff] %vm211, %v1476
    %1479 = vst.msk [vmem:[#allocation19 + $0x8] sm:$0xff] %vm211, %v1477
    // Predicated region
    $region98: #{tpu_custom_call.1} parent=1 // pred_check
      _
    $region99: #{tpu_custom_call.1} parent=1 // pred_check_branch
      %1481 = sbr.rel (0) target = $region101
    $region100: #{tpu_custom_call.1} parent=1 // pred_region
      %s1483 = ssub.s32 256, 256
      %1484 = vsyncadd [#allocation4], %s1483
      %s1485 = sshll.u32 [#allocation19], 4
      %s1486 = int_to_ptr.vmem [resolvable:$true] %s1485
      %1491 = dma.vmem_to_hbm [thread:$0]  %s1486, 256, %s14, [#allocation4], 128, 128, 8
    $region101: #{tpu_custom_call.1} parent=1 // pred_fallthru
      _
    // Predicated region
    $region102: #{tpu_custom_call.1} parent=1 // pred_check
      _
    $region103: #{tpu_custom_call.1} parent=1 // pred_check_branch
      %1493 = sbr.rel (0) target = $region105
    $region104: #{tpu_custom_call.1} parent=1 // pred_region
      %1494 = dma.done [#allocation4], 256
    $region105: #{tpu_custom_call.1} parent=1 // pred_fallthru
      _
    %1495 = vsyncpa [#allocation3], 1
    %1496 = vsyncpa [#allocation6], 1
    %1497 = vsyncpa [#allocation9], 1
    %1498 = vsyncpa [#allocation12], 1
    %1499 = vsyncpa [#allocation15], 1
    %1500 = vsyncpa [#allocation18], 1
    %1501 = vsyncpa [#allocation4], 1

</llo_original>
